<compile_context>
chip_gen: v7x
topology: tpu7x:2x2x1
jax: 0.10.0
libtpu: 0.0.40
codegen_flags: <defaults>
</compile_context>

<pallas_src>
import functools

import jax
import jax.numpy as jnp
from jax.experimental import pallas as pl
from jax.experimental.pallas import tpu as pltpu


# ------------------------------ activations ------------------------------

def _apply_act(y, nl: str):
    """Activation used inside the kernel; nl is a static (trace-time) choice."""
    one_sixth = jnp.asarray(1.0 / 6.0, dtype=y.dtype)
    if nl == "RE":    # nn.ReLU
        return jnp.maximum(y, 0.0)
    if nl == "LRE":   # nn.LeakyReLU (default negative_slope=0.01)
        return jnp.where(y >= 0.0, y, 0.01 * y)
    if nl == "RE6":   # nn.ReLU6
        return jnp.clip(y, 0.0, 6.0)
    if nl == "HS":    # HardSwish: x * relu6(x+3) / 6  (multiply by 1/6, no divide)
        return y * (jnp.clip(y + 3.0, 0.0, 6.0) * one_sixth)
    if nl == "HG":    # HardSigmoid: relu6(x+3) / 6
        return jnp.clip(y + 3.0, 0.0, 6.0) * one_sixth
    raise ValueError(f"unknown nl: {nl}")


def _act_ref(y, nl: str):
    """Reference activation matching the PyTorch formulas literally."""
    if nl == "RE":
        return jnp.maximum(y, 0.0)
    if nl == "LRE":
        return jnp.where(y >= 0.0, y, 0.01 * y)
    if nl == "RE6":
        return jnp.clip(y, 0.0, 6.0)
    if nl == "HS":
        return y * jnp.clip(y + 3.0, 0.0, 6.0) / 6.0
    if nl == "HG":
        return jnp.clip(y + 3.0, 0.0, 6.0) / 6.0
    raise ValueError(f"unknown nl: {nl}")


# ------------------------------ Pallas kernel ------------------------------

def _make_kernel(nl: str, use_res: bool):
    """Fused: patches @ W1 -> BN1(scale/bias) -> act -> @ W2 -> BN2 -> [+res]."""
    if use_res:
        def kernel(p_ref, w1_ref, s1_ref, b1_ref, w2_ref, s2_ref, b2_ref,
                   res_ref, o_ref):
            h = jnp.dot(p_ref[...], w1_ref[...],
                        preferred_element_type=jnp.float32)
            h = h * s1_ref[...] + b1_ref[...]
            h = _apply_act(h, nl)
            z = jnp.dot(h, w2_ref[...], preferred_element_type=jnp.float32)
            z = z * s2_ref[...] + b2_ref[...]
            o_ref[...] = (z + res_ref[...]).astype(o_ref.dtype)
    else:
        def kernel(p_ref, w1_ref, s1_ref, b1_ref, w2_ref, s2_ref, b2_ref,
                   o_ref):
            h = jnp.dot(p_ref[...], w1_ref[...],
                        preferred_element_type=jnp.float32)
            h = h * s1_ref[...] + b1_ref[...]
            h = _apply_act(h, nl)
            z = jnp.dot(h, w2_ref[...], preferred_element_type=jnp.float32)
            z = z * s2_ref[...] + b2_ref[...]
            o_ref[...] = z.astype(o_ref.dtype)
    return kernel


# ------------------------------ wrapper ------------------------------

def _im2col(x_nhwc, k, stride):
    """Extract kxk patches (row order (kh, kw, ci)) -> (N*Ho*Wo, k*k*C)."""
    N, H, W, C = x_nhwc.shape
    pad = (k - 1) // 2
    xp = jnp.pad(x_nhwc, ((0, 0), (pad, pad), (pad, pad), (0, 0)))
    Ho = (H + 2 * pad - k) // stride + 1
    Wo = (W + 2 * pad - k) // stride + 1
    cols = []
    for kh in range(k):
        for kw in range(k):
            cols.append(
                jax.lax.slice(
                    xp,
                    (0, kh, kw, 0),
                    (N, kh + (Ho - 1) * stride + 1,
                     kw + (Wo - 1) * stride + 1, C),
                    (1, stride, stride, 1),
                )
            )
    patches = jnp.concatenate(cols, axis=-1)            # (N, Ho, Wo, k*k*C)
    return patches.reshape(N * Ho * Wo, k * k * C), (N, Ho, Wo)


@functools.partial(
    jax.jit,
    static_argnames=("kernel_size", "stride", "nl", "use_res",
                     "block_rows", "eps"))
def wfused_ibn_forward(x_nchw, w1, gamma1, beta1, mean1, var1,
                       w2, gamma2, beta2, mean2, var2,
                       *, kernel_size, stride, nl, use_res,
                       block_rows=256, eps=1e-5):
    """WFusedIBN forward (eval-mode BN) via one fused Pallas kernel."""
    N, Cin, H, W = x_nchw.shape
    x_nhwc = jnp.transpose(x_nchw, (0, 2, 3, 1))
    patches, (_, Ho, Wo) = _im2col(x_nhwc, kernel_size, stride)
    K = kernel_size * kernel_size * Cin
    hidden = w1.shape[-1]
    oup = w2.shape[-1]
    M = N * Ho * Wo

    # Fold eval-mode BatchNorm into per-channel scale/bias.
    inv1 = gamma1 / jnp.sqrt(var1 + eps)
    s1 = inv1.reshape(1, hidden).astype(jnp.float32)
    b1 = (beta1 - mean1 * inv1).reshape(1, hidden).astype(jnp.float32)
    inv2 = gamma2 / jnp.sqrt(var2 + eps)
    s2 = inv2.reshape(1, oup).astype(jnp.float32)
    b2 = (beta2 - mean2 * inv2).reshape(1, oup).astype(jnp.float32)

    # (kh, kw, ci) row ordering matches the im2col column ordering.
    w1_mat = w1.reshape(K, hidden).astype(jnp.float32)
    w2_mat = w2.astype(jnp.float32)

    # Row tiling: big blocks (multiple of 8 sublanes), pad only if needed.
    tm = max(8, min(block_rows, pl.cdiv(M, 8) * 8))
    tm = (tm // 8) * 8
    M_pad = pl.cdiv(M, tm) * tm

    res2d = x_nhwc.reshape(M, Cin) if use_res else None
    if M_pad != M:   # single pad, only when the row count is not a tile multiple
        patches = jnp.pad(patches, ((0, M_pad - M), (0, 0)))
        if use_res:
            res2d = jnp.pad(res2d, ((0, M_pad - M), (0, 0)))

    grid = (M_pad // tm,)
    in_specs = [
        pl.BlockSpec((tm, K), lambda i: (i, 0)),          # patches tile
        pl.BlockSpec((K, hidden), lambda i: (0, 0)),      # W1 (resident)
        pl.BlockSpec((1, hidden), lambda i: (0, 0)),      # BN1 scale
        pl.BlockSpec((1, hidden), lambda i: (0, 0)),      # BN1 bias
        pl.BlockSpec((hidden, oup), lambda i: (0, 0)),    # W2 (resident)
        pl.BlockSpec((1, oup), lambda i: (0, 0)),         # BN2 scale
        pl.BlockSpec((1, oup), lambda i: (0, 0)),         # BN2 bias
    ]
    args = [patches, w1_mat, s1, b1, w2_mat, s2, b2]
    if use_res:
        in_specs.append(pl.BlockSpec((tm, oup), lambda i: (i, 0)))
        args.append(res2d)

    out2d = pl.pallas_call(
        _make_kernel(nl, use_res),
        out_shape=jax.ShapeDtypeStruct((M_pad, oup), x_nchw.dtype),
        grid=grid,
        in_specs=in_specs,
        out_specs=pl.BlockSpec((tm, oup), lambda i: (i, 0)),
        compiler_params=pltpu.CompilerParams(
            dimension_semantics=("parallel",)),
    )(*args)

    if M_pad != M:
        out2d = out2d[:M]
    out = out2d.reshape(N, Ho, Wo, oup)
    return jnp.transpose(out, (0, 3, 1, 2))


# ------------------------------ pure-JAX reference ------------------------------

def wfused_ibn_ref(x_nchw, w1, gamma1, beta1, mean1, var1,
                   w2, gamma2, beta2, mean2, var2,
                   *, kernel_size, stride, nl, use_res, eps=1e-5):
    x = jnp.transpose(x_nchw, (0, 2, 3, 1)).astype(jnp.float32)
    pad = (kernel_size - 1) // 2
    y = jax.lax.conv_general_dilated(
        x, w1, window_strides=(stride, stride),
        padding=((pad, pad), (pad, pad)),
        dimension_numbers=("NHWC", "HWIO", "NHWC"),
        precision=jax.lax.Precision.HIGHEST)
    y = (y - mean1) / jnp.sqrt(var1 + eps) * gamma1 + beta1
    y = _act_ref(y, nl)
    z = jnp.einsum("nhwc,co->nhwo", y, w2,
                   precision=jax.lax.Precision.HIGHEST)
    z = (z - mean2) / jnp.sqrt(var2 + eps) * gamma2 + beta2
    if use_res:
        z = z + x
    return jnp.transpose(z, (0, 3, 1, 2)).astype(x_nchw.dtype)


# ------------------------------ test ------------------------------

if __name__ == "__main__":
    key = jax.random.PRNGKey(0)
    ks = jax.random.split(key, 12)

    # WFusedIBN(inp=4, oup=4, kernel_size=3, stride=1, expand_ratio=2, nl='HS')
    N, inp, H, W = 2, 4, 16, 16
    oup, kernel_size, stride, expand_ratio, nl = 4, 3, 1, 2.0, "HS"
    hidden = int(round(inp * expand_ratio))
    use_res = (stride == 1 and inp == oup)

    x = jax.random.normal(ks[0], (N, inp, H, W), dtype=jnp.float32)
    w1 = jax.random.normal(ks[1], (kernel_size, kernel_size, inp, hidden),
                           dtype=jnp.float32) * 0.3
    w2 = jax.random.normal(ks[2], (hidden, oup), dtype=jnp.float32) * 0.3
    gamma1 = jax.random.uniform(ks[3], (hidden,), jnp.float32, 0.5, 1.5)
    beta1 = jax.random.normal(ks[4], (hidden,), dtype=jnp.float32) * 0.1
    mean1 = jax.random.normal(ks[5], (hidden,), dtype=jnp.float32) * 0.1
    var1 = jax.random.uniform(ks[6], (hidden,), jnp.float32, 0.5, 1.5)
    gamma2 = jax.random.uniform(ks[7], (oup,), jnp.float32, 0.5, 1.5)
    beta2 = jax.random.normal(ks[8], (oup,), dtype=jnp.float32) * 0.1
    mean2 = jax.random.normal(ks[9], (oup,), dtype=jnp.float32) * 0.1
    var2 = jax.random.uniform(ks[10], (oup,), jnp.float32, 0.5, 1.5)

    y = wfused_ibn_forward(
        x, w1, gamma1, beta1, mean1, var1, w2, gamma2, beta2, mean2, var2,
        kernel_size=kernel_size, stride=stride, nl=nl, use_res=use_res)
    y = jax.block_until_ready(y)

    y_ref = wfused_ibn_ref(
        x, w1, gamma1, beta1, mean1, var1, w2, gamma2, beta2, mean2, var2,
        kernel_size=kernel_size, stride=stride, nl=nl, use_res=use_res)

    assert y.shape == y_ref.shape == (N, oup, H, W)
    assert y.dtype == x.dtype
    max_err = float(jnp.max(jnp.abs(y - y_ref)))
    assert jnp.allclose(y, y_ref, atol=2e-3, rtol=2e-3), f"max abs err {max_err}"
    print("KERNEL_OK")
</pallas_src>

<mosaic_0001>
module attributes {stable_mosaic.version = 11 : i64} {
  func.func @kernel(%arg0: i32, %arg1: memref<256x36xf32, #tpu.memory_space<vmem>>, %arg2: memref<36x8xf32, #tpu.memory_space<vmem>>, %arg3: memref<1x8xf32, #tpu.memory_space<vmem>>, %arg4: memref<1x8xf32, #tpu.memory_space<vmem>>, %arg5: memref<8x4xf32, #tpu.memory_space<vmem>>, %arg6: memref<1x4xf32, #tpu.memory_space<vmem>>, %arg7: memref<1x4xf32, #tpu.memory_space<vmem>>, %arg8: memref<256x4xf32, #tpu.memory_space<vmem>>, %arg9: memref<256x4xf32, #tpu.memory_space<vmem>>) attributes {dimension_semantics = [#tpu.dimension_semantics<parallel>], iteration_bounds = array<i64: 2>, scalar_prefetch = 0 : i64, scratch_operands = 0 : i64, tpu.core_type = #tpu.core_type<tc>, window_params = [{transform_indices = @transform_0, window_bounds = array<i64: 256, 36>}, {pipeline_mode = #tpu.pipeline_mode<synchronous>, transform_indices = @transform_1, window_bounds = array<i64: 36, 8>}, {pipeline_mode = #tpu.pipeline_mode<synchronous>, transform_indices = @transform_2, window_bounds = array<i64: 1, 8>}, {pipeline_mode = #tpu.pipeline_mode<synchronous>, transform_indices = @transform_3, window_bounds = array<i64: 1, 8>}, {pipeline_mode = #tpu.pipeline_mode<synchronous>, transform_indices = @transform_4, window_bounds = array<i64: 8, 4>}, {pipeline_mode = #tpu.pipeline_mode<synchronous>, transform_indices = @transform_5, window_bounds = array<i64: 1, 4>}, {pipeline_mode = #tpu.pipeline_mode<synchronous>, transform_indices = @transform_6, window_bounds = array<i64: 1, 4>}, {transform_indices = @transform_7, window_bounds = array<i64: 256, 4>}, {transform_indices = @transform_8, window_bounds = array<i64: 256, 4>}]} {
    %c0 = arith.constant 0 : index
    %c0_0 = arith.constant 0 : index
    %0 = vector.load %arg1[%c0, %c0_0] : memref<256x36xf32, #tpu.memory_space<vmem>>, vector<256x36xf32>
    %c0_1 = arith.constant 0 : index
    %c0_2 = arith.constant 0 : index
    %1 = vector.load %arg2[%c0_1, %c0_2] : memref<36x8xf32, #tpu.memory_space<vmem>>, vector<36x8xf32>
    %cst = arith.constant dense<0.000000e+00> : vector<256x8xf32>
    %2 = tpu.matmul %0, %1, %cst {dimension_numbers = #tpu.dot_dimension_numbers<[1], [0], [0], [1], [0, 0, 1, 1], [], []>} : vector<256x36xf32>, vector<36x8xf32>, vector<256x8xf32> -> vector<256x8xf32>
    %c0_3 = arith.constant 0 : index
    %c0_4 = arith.constant 0 : index
    %3 = vector.load %arg3[%c0_3, %c0_4] : memref<1x8xf32, #tpu.memory_space<vmem>>, vector<1x8xf32>
    %4 = vector.broadcast %3 : vector<1x8xf32> to vector<256x8xf32>
    %5 = arith.mulf %2, %4 : vector<256x8xf32>
    %c0_5 = arith.constant 0 : index
    %c0_6 = arith.constant 0 : index
    %6 = vector.load %arg4[%c0_5, %c0_6] : memref<1x8xf32, #tpu.memory_space<vmem>>, vector<1x8xf32>
    %7 = vector.broadcast %6 : vector<1x8xf32> to vector<256x8xf32>
    %8 = arith.addf %5, %7 : vector<256x8xf32>
    %cst_7 = arith.constant 3.000000e+00 : f32
    %9 = vector.broadcast %cst_7 : f32 to vector<256x8xf32>
    %10 = arith.addf %8, %9 : vector<256x8xf32>
    %cst_8 = arith.constant 0.000000e+00 : f32
    %cst_9 = arith.constant 6.000000e+00 : f32
    %11 = vector.broadcast %cst_8 : f32 to vector<256x8xf32>
    %12 = arith.maximumf %11, %10 : vector<256x8xf32>
    %13 = vector.broadcast %cst_9 : f32 to vector<256x8xf32>
    %14 = arith.minimumf %13, %12 : vector<256x8xf32>
    %cst_10 = arith.constant 0.166666672 : f32
    %15 = vector.broadcast %cst_10 : f32 to vector<256x8xf32>
    %16 = arith.mulf %14, %15 : vector<256x8xf32>
    %17 = arith.mulf %8, %16 : vector<256x8xf32>
    %c0_11 = arith.constant 0 : index
    %c0_12 = arith.constant 0 : index
    %18 = vector.load %arg5[%c0_11, %c0_12] : memref<8x4xf32, #tpu.memory_space<vmem>>, vector<8x4xf32>
    %cst_13 = arith.constant dense<0.000000e+00> : vector<256x4xf32>
    %19 = tpu.matmul %17, %18, %cst_13 {dimension_numbers = #tpu.dot_dimension_numbers<[1], [0], [0], [1], [0, 0, 1, 1], [], []>} : vector<256x8xf32>, vector<8x4xf32>, vector<256x4xf32> -> vector<256x4xf32>
    %c0_14 = arith.constant 0 : index
    %c0_15 = arith.constant 0 : index
    %20 = vector.load %arg6[%c0_14, %c0_15] : memref<1x4xf32, #tpu.memory_space<vmem>>, vector<1x4xf32>
    %21 = vector.broadcast %20 : vector<1x4xf32> to vector<256x4xf32>
    %22 = arith.mulf %19, %21 : vector<256x4xf32>
    %c0_16 = arith.constant 0 : index
    %c0_17 = arith.constant 0 : index
    %23 = vector.load %arg7[%c0_16, %c0_17] : memref<1x4xf32, #tpu.memory_space<vmem>>, vector<1x4xf32>
    %24 = vector.broadcast %23 : vector<1x4xf32> to vector<256x4xf32>
    %25 = arith.addf %22, %24 : vector<256x4xf32>
    %c0_18 = arith.constant 0 : index
    %c0_19 = arith.constant 0 : index
    %26 = vector.load %arg8[%c0_18, %c0_19] : memref<256x4xf32, #tpu.memory_space<vmem>>, vector<256x4xf32>
    %27 = arith.addf %25, %26 : vector<256x4xf32>
    %c0_20 = arith.constant 0 : index
    %c0_21 = arith.constant 0 : index
    %28 = vector.load %arg9[%c0_20, %c0_21] : memref<256x4xf32, #tpu.memory_space<vmem>>, vector<256x4xf32>
    tpu.vector_store %arg9[%c0_20, %c0_21], %27 {strides = array<i32>} : memref<256x4xf32, #tpu.memory_space<vmem>>, vector<256x4xf32>,
    return
  }
  func.func @transform_0(%arg0: i32) -> (i32, i32) {
    %c0_i32 = arith.constant 0 : i32
    %c0_i32_0 = arith.constant 0 : i32
    return %arg0, %c0_i32 : i32, i32
  }
  func.func @transform_1(%arg0: i32) -> (i32, i32) {
    %c0_i32 = arith.constant 0 : i32
    %c0_i32_0 = arith.constant 0 : i32
    %c0_i32_1 = arith.constant 0 : i32
    return %c0_i32, %c0_i32_0 : i32, i32
  }
  func.func @transform_2(%arg0: i32) -> (i32, i32) {
    %c0_i32 = arith.constant 0 : i32
    %c0_i32_0 = arith.constant 0 : i32
    %c0_i32_1 = arith.constant 0 : i32
    return %c0_i32, %c0_i32_0 : i32, i32
  }
  func.func @transform_3(%arg0: i32) -> (i32, i32) {
    %c0_i32 = arith.constant 0 : i32
    %c0_i32_0 = arith.constant 0 : i32
    %c0_i32_1 = arith.constant 0 : i32
    return %c0_i32, %c0_i32_0 : i32, i32
  }
  func.func @transform_4(%arg0: i32) -> (i32, i32) {
    %c0_i32 = arith.constant 0 : i32
    %c0_i32_0 = arith.constant 0 : i32
    %c0_i32_1 = arith.constant 0 : i32
    return %c0_i32, %c0_i32_0 : i32, i32
  }
  func.func @transform_5(%arg0: i32) -> (i32, i32) {
    %c0_i32 = arith.constant 0 : i32
    %c0_i32_0 = arith.constant 0 : i32
    %c0_i32_1 = arith.constant 0 : i32
    return %c0_i32, %c0_i32_0 : i32, i32
  }
  func.func @transform_6(%arg0: i32) -> (i32, i32) {
    %c0_i32 = arith.constant 0 : i32
    %c0_i32_0 = arith.constant 0 : i32
    %c0_i32_1 = arith.constant 0 : i32
    return %c0_i32, %c0_i32_0 : i32, i32
  }
  func.func @transform_7(%arg0: i32) -> (i32, i32) {
    %c0_i32 = arith.constant 0 : i32
    %c0_i32_0 = arith.constant 0 : i32
    return %arg0, %c0_i32 : i32, i32
  }
  func.func @transform_8(%arg0: i32) -> (i32, i32) {
    %c0_i32 = arith.constant 0 : i32
    %c0_i32_0 = arith.constant 0 : i32
    return %arg0, %c0_i32 : i32, i32
  }
}

</mosaic_0001>

<llo_original>
// kernel: wfused_ibn_forward.1
$region0: #{wfused_ibn_forward.1}
  #allocation0 [shape = 'u32[]', space=smem, size = 0x4, offset = 0x4, fixed_abs, tag = 'smem constant byte address 0x4 - core index']
  #allocation1 [shape = 'u32[144,128]{1,0:T(1,128)}', space=vmem, size = 0x12000, scoped, tag = 'internal scratch']
  %s0 = inlined_call_operand.vmem [shape: f32[512,36], index: 0, kind: input, shape index: {}]
  %s1 = inlined_call_operand.vmem [shape: f32[36,8], index: 1, kind: input, shape index: {}]
  %s2 = inlined_call_operand.vmem [shape: f32[1,8], index: 2, kind: input, shape index: {}]
  %s3 = inlined_call_operand.vmem [shape: f32[1,8], index: 3, kind: input, shape index: {}]
  %s4 = inlined_call_operand.vmem [shape: f32[8,4], index: 4, kind: input, shape index: {}]
  %s5 = inlined_call_operand.vmem [shape: f32[1,4], index: 5, kind: input, shape index: {}]
  %s6 = inlined_call_operand.vmem [shape: f32[1,4], index: 6, kind: input, shape index: {}]
  %s7 = inlined_call_operand.vmem [shape: f32[512,4], index: 7, kind: input, shape index: {}]
  %s8 = inlined_call_operand.vmem [shape: f32[512,4], index: 8, kind: output, shape index: {}]
  %s9 = sld [smem:[#allocation0]]
  $region65: #{wfused_ibn_forward.1} parent=0
    _
  %s11 = ssub.s32 1, %s9
  %s12 = scalar_select 0, %s11, %s9
  loop: start=0, step=1, limit=4
  $region2: #{wfused_ibn_forward.1} parent=0 // loop_pre_header
    _
  $region3: #{wfused_ibn_forward.1} parent=0 // loop_header
    %s14 = sphi 0, %s18
    %p15 = scmp.ge.s32.totalorder %s14, 4
    %s24 = sphi 0, %s26
    %s27 = sphi 0, %s24
    %s28 = sphi 0, %s27
    %s44 = sphi 0, %s28
    %s48 = sphi 0, %s48
    %s50 = sphi 0, %s48
    %s51 = sphi 0, %s50
    %s65 = sphi 0, %s51
    %s69 = sphi 0, %s69
    %s71 = sphi 0, %s69
    %s72 = sphi 0, %s71
    %s86 = sphi 0, %s72
    %s90 = sphi 0, %s90
    %s92 = sphi 0, %s90
    %s93 = sphi 0, %s92
    %s107 = sphi 0, %s93
    %s111 = sphi 0, %s111
    %s113 = sphi 0, %s111
    %s114 = sphi 0, %s113
    %s128 = sphi 0, %s114
    %s132 = sphi 0, %s132
    %s134 = sphi 0, %s132
    %s135 = sphi 0, %s134
    %s149 = sphi 0, %s135
    %s153 = sphi 0, %s153
    %s155 = sphi 0, %s153
    %s156 = sphi 0, %s155
    %s170 = sphi 0, %s156
    %s176 = sphi 0, %s178
    %s179 = sphi 0, %s176
    %s180 = sphi 0, %s179
    %s196 = sphi 0, %s180
    %s202 = sphi 0, %s204
    %s205 = sphi 0, %s202
    %s206 = sphi 0, %s205
    %s222 = sphi 0, %s206
  $region4: #{wfused_ibn_forward.1} parent=0 // loop_header_branch
    %17 = sbr.rel (%p15) target = $region8
  $region5: #{wfused_ibn_forward.1} parent=0 // loop_body
    %s19 = ssub.s32 %s14, 1
    %s20 = ssub.s32 %s14, 2
    %s21 = sadd.s32 %s14, 1
    %s22 = ssub.s32 %s14, %s21
    %p23 = scmp.eq.s32.totalorder %s22, 0
    %s25 = sadd.s32 %s24, 1
    %s26 = scalar_select %p23, %s24, %s25
    %p29 = pneg %p23
    %p30 = scmp.eq.s32.totalorder %s14, 1
    %p31 = por %p29, %p30
    %p32 = scmp.ne.s32.totalorder %s24, %s27
    %p33 = scmp.eq.s32.totalorder %s14, 0
    %p34 = por %p32, %p33
    %p35 = scmp.ne.s32.totalorder %s24, %s27
    %p36 = scmp.eq.s32.totalorder %s19, 1
    %p37 = por %p35, %p36
    %p38 = scmp.ne.s32.totalorder %s27, %s28
    %p39 = scmp.eq.s32.totalorder %s19, 0
    %p40 = por %p38, %p39
    %p41 = scmp.ne.s32.totalorder %s27, %s28
    %p42 = scmp.eq.s32.totalorder %s20, 1
    %p43 = por %p41, %p42
    %p45 = scmp.ne.s32.totalorder %s28, %s44
    %p46 = scmp.eq.s32.totalorder %s20, 0
    %p47 = por %p45, %p46
    %s49 = sadd.s32 %s48, 1
    %p52 = scmp.eq.s32.totalorder %s14, 1
    %p53 = scmp.ne.s32.totalorder %s48, %s50
    %p54 = scmp.eq.s32.totalorder %s14, 0
    %p55 = por %p53, %p54
    %p56 = scmp.ne.s32.totalorder %s48, %s50
    %p57 = scmp.eq.s32.totalorder %s19, 1
    %p58 = por %p56, %p57
    %p59 = scmp.ne.s32.totalorder %s50, %s51
    %p60 = scmp.eq.s32.totalorder %s19, 0
    %p61 = por %p59, %p60
    %p62 = scmp.ne.s32.totalorder %s50, %s51
    %p63 = scmp.eq.s32.totalorder %s20, 1
    %p64 = por %p62, %p63
    %p66 = scmp.ne.s32.totalorder %s51, %s65
    %p67 = scmp.eq.s32.totalorder %s20, 0
    %p68 = por %p66, %p67
    %s70 = sadd.s32 %s69, 1
    %p73 = scmp.eq.s32.totalorder %s14, 1
    %p74 = scmp.ne.s32.totalorder %s69, %s71
    %p75 = scmp.eq.s32.totalorder %s14, 0
    %p76 = por %p74, %p75
    %p77 = scmp.ne.s32.totalorder %s69, %s71
    %p78 = scmp.eq.s32.totalorder %s19, 1
    %p79 = por %p77, %p78
    %p80 = scmp.ne.s32.totalorder %s71, %s72
    %p81 = scmp.eq.s32.totalorder %s19, 0
    %p82 = por %p80, %p81
    %p83 = scmp.ne.s32.totalorder %s71, %s72
    %p84 = scmp.eq.s32.totalorder %s20, 1
    %p85 = por %p83, %p84
    %p87 = scmp.ne.s32.totalorder %s72, %s86
    %p88 = scmp.eq.s32.totalorder %s20, 0
    %p89 = por %p87, %p88
    %s91 = sadd.s32 %s90, 1
    %p94 = scmp.eq.s32.totalorder %s14, 1
    %p95 = scmp.ne.s32.totalorder %s90, %s92
    %p96 = scmp.eq.s32.totalorder %s14, 0
    %p97 = por %p95, %p96
    %p98 = scmp.ne.s32.totalorder %s90, %s92
    %p99 = scmp.eq.s32.totalorder %s19, 1
    %p100 = por %p98, %p99
    %p101 = scmp.ne.s32.totalorder %s92, %s93
    %p102 = scmp.eq.s32.totalorder %s19, 0
    %p103 = por %p101, %p102
    %p104 = scmp.ne.s32.totalorder %s92, %s93
    %p105 = scmp.eq.s32.totalorder %s20, 1
    %p106 = por %p104, %p105
    %p108 = scmp.ne.s32.totalorder %s93, %s107
    %p109 = scmp.eq.s32.totalorder %s20, 0
    %p110 = por %p108, %p109
    %s112 = sadd.s32 %s111, 1
    %p115 = scmp.eq.s32.totalorder %s14, 1
    %p116 = scmp.ne.s32.totalorder %s111, %s113
    %p117 = scmp.eq.s32.totalorder %s14, 0
    %p118 = por %p116, %p117
    %p119 = scmp.ne.s32.totalorder %s111, %s113
    %p120 = scmp.eq.s32.totalorder %s19, 1
    %p121 = por %p119, %p120
    %p122 = scmp.ne.s32.totalorder %s113, %s114
    %p123 = scmp.eq.s32.totalorder %s19, 0
    %p124 = por %p122, %p123
    %p125 = scmp.ne.s32.totalorder %s113, %s114
    %p126 = scmp.eq.s32.totalorder %s20, 1
    %p127 = por %p125, %p126
    %p129 = scmp.ne.s32.totalorder %s114, %s128
    %p130 = scmp.eq.s32.totalorder %s20, 0
    %p131 = por %p129, %p130
    %s133 = sadd.s32 %s132, 1
    %p136 = scmp.eq.s32.totalorder %s14, 1
    %p137 = scmp.ne.s32.totalorder %s132, %s134
    %p138 = scmp.eq.s32.totalorder %s14, 0
    %p139 = por %p137, %p138
    %p140 = scmp.ne.s32.totalorder %s132, %s134
    %p141 = scmp.eq.s32.totalorder %s19, 1
    %p142 = por %p140, %p141
    %p143 = scmp.ne.s32.totalorder %s134, %s135
    %p144 = scmp.eq.s32.totalorder %s19, 0
    %p145 = por %p143, %p144
    %p146 = scmp.ne.s32.totalorder %s134, %s135
    %p147 = scmp.eq.s32.totalorder %s20, 1
    %p148 = por %p146, %p147
    %p150 = scmp.ne.s32.totalorder %s135, %s149
    %p151 = scmp.eq.s32.totalorder %s20, 0
    %p152 = por %p150, %p151
    %s154 = sadd.s32 %s153, 1
    %p157 = scmp.eq.s32.totalorder %s14, 1
    %p158 = scmp.ne.s32.totalorder %s153, %s155
    %p159 = scmp.eq.s32.totalorder %s14, 0
    %p160 = por %p158, %p159
    %p161 = scmp.ne.s32.totalorder %s153, %s155
    %p162 = scmp.eq.s32.totalorder %s19, 1
    %p163 = por %p161, %p162
    %p164 = scmp.ne.s32.totalorder %s155, %s156
    %p165 = scmp.eq.s32.totalorder %s19, 0
    %p166 = por %p164, %p165
    %p167 = scmp.ne.s32.totalorder %s155, %s156
    %p168 = scmp.eq.s32.totalorder %s20, 1
    %p169 = por %p167, %p168
    %p171 = scmp.ne.s32.totalorder %s156, %s170
    %p172 = scmp.eq.s32.totalorder %s20, 0
    %p173 = por %p171, %p172
    %s174 = ssub.s32 %s14, %s21
    %p175 = scmp.eq.s32.totalorder %s174, 0
    %s177 = sadd.s32 %s176, 1
    %s178 = scalar_select %p175, %s176, %s177
    %p181 = pneg %p175
    %p182 = scmp.eq.s32.totalorder %s14, 1
    %p183 = por %p181, %p182
    %p184 = scmp.ne.s32.totalorder %s176, %s179
    %p185 = scmp.eq.s32.totalorder %s14, 0
    %p186 = por %p184, %p185
    %p187 = scmp.ne.s32.totalorder %s176, %s179
    %p188 = scmp.eq.s32.totalorder %s19, 1
    %p189 = por %p187, %p188
    %p190 = scmp.ne.s32.totalorder %s179, %s180
    %p191 = scmp.eq.s32.totalorder %s19, 0
    %p192 = por %p190, %p191
    %p193 = scmp.ne.s32.totalorder %s179, %s180
    %p194 = scmp.eq.s32.totalorder %s20, 1
    %p195 = por %p193, %p194
    %p197 = scmp.ne.s32.totalorder %s180, %s196
    %p198 = scmp.eq.s32.totalorder %s20, 0
    %p199 = por %p197, %p198
    %s200 = ssub.s32 %s14, %s21
    %p201 = scmp.eq.s32.totalorder %s200, 0
    %s203 = sadd.s32 %s202, 1
    %s204 = scalar_select %p201, %s202, %s203
    %p207 = pneg %p201
    %p208 = scmp.eq.s32.totalorder %s14, 1
    %p209 = por %p207, %p208
    %p210 = scmp.ne.s32.totalorder %s202, %s205
    %p211 = scmp.eq.s32.totalorder %s14, 0
    %p212 = por %p210, %p211
    %p213 = scmp.ne.s32.totalorder %s202, %s205
    %p214 = scmp.eq.s32.totalorder %s19, 1
    %p215 = por %p213, %p214
    %p216 = scmp.ne.s32.totalorder %s205, %s206
    %p217 = scmp.eq.s32.totalorder %s19, 0
    %p218 = por %p216, %p217
    %p219 = scmp.ne.s32.totalorder %s205, %s206
    %p220 = scmp.eq.s32.totalorder %s20, 1
    %p221 = por %p219, %p220
    %p223 = scmp.ne.s32.totalorder %s206, %s222
    %p224 = scmp.eq.s32.totalorder %s20, 0
    %p225 = por %p223, %p224
    %p226 = scmp.le.s32.totalorder 1, %s14
    %p227 = scmp.lt.s32.totalorder %s14, 3
    %p228 = pnand %p226, %p227
    %p229 = pneg %p228
    // Predicated region
    $region9: #{wfused_ibn_forward.1} parent=5 // pred_check
      _
    $region10: #{wfused_ibn_forward.1} parent=5 // pred_check_branch
      %231 = sbr.rel (%p228) target = $region12
    $region11: #{wfused_ibn_forward.1} parent=5 // pred_region
      %s232 = ssub.s32 %s14, 1
      // Predicated region
      $region13: #{wfused_ibn_forward.1} parent=11 // pred_check
        %p233 = pneg %p61
      $region14: #{wfused_ibn_forward.1} parent=11 // pred_check_branch
        %235 = sbr.rel (%p233) target = $region16
      $region15: #{wfused_ibn_forward.1} parent=11 // pred_region
        _
      $region16: #{wfused_ibn_forward.1} parent=11 // pred_fallthru
        _
      // Predicated region
      $region17: #{wfused_ibn_forward.1} parent=11 // pred_check
        %p236 = pneg %p82
      $region18: #{wfused_ibn_forward.1} parent=11 // pred_check_branch
        %238 = sbr.rel (%p236) target = $region20
      $region19: #{wfused_ibn_forward.1} parent=11 // pred_region
        _
      $region20: #{wfused_ibn_forward.1} parent=11 // pred_fallthru
        _
      // Predicated region
      $region21: #{wfused_ibn_forward.1} parent=11 // pred_check
        %p239 = pneg %p103
      $region22: #{wfused_ibn_forward.1} parent=11 // pred_check_branch
        %241 = sbr.rel (%p239) target = $region24
      $region23: #{wfused_ibn_forward.1} parent=11 // pred_region
        _
      $region24: #{wfused_ibn_forward.1} parent=11 // pred_fallthru
        _
      // Predicated region
      $region25: #{wfused_ibn_forward.1} parent=11 // pred_check
        %p242 = pneg %p124
      $region26: #{wfused_ibn_forward.1} parent=11 // pred_check_branch
        %244 = sbr.rel (%p242) target = $region28
      $region27: #{wfused_ibn_forward.1} parent=11 // pred_region
        _
      $region28: #{wfused_ibn_forward.1} parent=11 // pred_fallthru
        _
      // Predicated region
      $region29: #{wfused_ibn_forward.1} parent=11 // pred_check
        %p245 = pneg %p145
      $region30: #{wfused_ibn_forward.1} parent=11 // pred_check_branch
        %247 = sbr.rel (%p245) target = $region32
      $region31: #{wfused_ibn_forward.1} parent=11 // pred_region
        _
      $region32: #{wfused_ibn_forward.1} parent=11 // pred_fallthru
        _
      // Predicated region
      $region33: #{wfused_ibn_forward.1} parent=11 // pred_check
        %p248 = pneg %p166
      $region34: #{wfused_ibn_forward.1} parent=11 // pred_check_branch
        %250 = sbr.rel (%p248) target = $region36
      $region35: #{wfused_ibn_forward.1} parent=11 // pred_region
        _
      $region36: #{wfused_ibn_forward.1} parent=11 // pred_fallthru
        _
    $region12: #{wfused_ibn_forward.1} parent=5 // pred_fallthru
      _
    %p251 = scmp.lt.s32.totalorder %s14, 2
    // Predicated region
    $region37: #{wfused_ibn_forward.1} parent=5 // pred_check
      %p252 = pneg %p251
    $region38: #{wfused_ibn_forward.1} parent=5 // pred_check_branch
      %254 = sbr.rel (%p252) target = $region40
    $region39: #{wfused_ibn_forward.1} parent=5 // pred_region
      // Predicated region
      $region41: #{wfused_ibn_forward.1} parent=39 // pred_check
        %p255 = pneg %p34
      $region42: #{wfused_ibn_forward.1} parent=39 // pred_check_branch
        %257 = sbr.rel (%p255) target = $region44
      $region43: #{wfused_ibn_forward.1} parent=39 // pred_region
        %s258 = smul.u32 32, %s14
        %p259 = scmp.lt.s32.totalorder %s258, 63
        %s260 = scalar_select %p259, %s258, 63
        %s261 = smul.addr %s260, 8
        %s262 = scalar_lea.vmem %s0, %s261
        %s263 = smul.u32 32, %s14
      $region44: #{wfused_ibn_forward.1} parent=39 // pred_fallthru
        _
      // Predicated region
      $region45: #{wfused_ibn_forward.1} parent=39 // pred_check
        %p264 = pneg %p186
      $region46: #{wfused_ibn_forward.1} parent=39 // pred_check_branch
        %266 = sbr.rel (%p264) target = $region48
      $region47: #{wfused_ibn_forward.1} parent=39 // pred_region
        %s267 = smul.u32 32, %s14
        %p268 = scmp.lt.s32.totalorder %s267, 63
        %s269 = scalar_select %p268, %s267, 63
        %s270 = smul.addr %s269, 8
        %s271 = scalar_lea.vmem %s7, %s270
        %s272 = smul.u32 32, %s14
      $region48: #{wfused_ibn_forward.1} parent=39 // pred_fallthru
        _
    $region40: #{wfused_ibn_forward.1} parent=5 // pred_fallthru
      _
    %p273 = scmp.le.s32.totalorder 1, %s14
    %p274 = scmp.lt.s32.totalorder %s14, 3
    %p275 = pnand %p273, %p274
    %p276 = pneg %p275
    // Predicated region
    $region49: #{wfused_ibn_forward.1} parent=5 // pred_check
      _
    $region50: #{wfused_ibn_forward.1} parent=5 // pred_check_branch
      %278 = sbr.rel (%p275) target = $region52
    $region51: #{wfused_ibn_forward.1} parent=5 // pred_region
      %s279 = ssub.s32 %s14, 1
      %s280 = smul.u32 32, %s19
      %p281 = scmp.lt.s32.totalorder %s280, 63
      %s282 = scalar_select %p281, %s280, 63
      %s283 = smul.addr %s282, 8
      %s284 = scalar_lea.vmem %s0, %s283
      %p285 = pneg %p40
      %p286 = pneg %p37
      %p287 = pneg %p61
      %p288 = pneg %p58
      %p289 = pneg %p82
      %p290 = pneg %p79
      %p291 = pneg %p103
      %p292 = pneg %p100
      %p293 = pneg %p124
      %p294 = pneg %p121
      %p295 = pneg %p145
      %p296 = pneg %p142
      %p297 = pneg %p166
      %p298 = pneg %p163
      %s299 = smul.u32 32, %s19
      %p300 = scmp.lt.s32.totalorder %s299, 63
      %s301 = scalar_select %p300, %s299, 63
      %s302 = smul.addr %s301, 8
      %s303 = scalar_lea.vmem %s7, %s302
      %p304 = pneg %p192
      %p305 = pneg %p189
      %p306 = pneg %p218
      %p307 = pneg %p215
      %s308 = smul.u32 32, %s19
      %p309 = scmp.lt.s32.totalorder %s308, 63
      %s310 = scalar_select %p309, %s308, 63
      %s311 = smul.addr %s310, 8
      %s312 = scalar_lea.vmem %s8, %s311
      %s313 = smul.u32 32, %s19
      %p314 = scmp.lt.s32.totalorder %s313, 63
      %s315 = scalar_select %p314, %s313, 63
      %s316 = smul.addr %s315, 8
      %s317 = scalar_lea.vmem %s0, %s316
      %s318 = smul.u32 32, %s19
      %s319 = smul.u32 32, %s19
      %p320 = scmp.lt.s32.totalorder %s319, 63
      %s321 = scalar_select %p320, %s319, 63
      %s322 = smul.addr %s321, 8
      %s323 = scalar_lea.vmem %s7, %s322
      %s324 = smul.u32 32, %s19
      %s325 = smul.u32 32, %s19
      %p326 = scmp.lt.s32.totalorder %s325, 63
      %s327 = scalar_select %p326, %s325, 63
      %s328 = smul.addr %s327, 8
      %s329 = scalar_lea.vmem %s8, %s328
      %s330 = smul.u32 32, %s19
      %v331 = vld [vmem:[%s317] sm:$0xff]
      %v332 = vld [vmem:[%s317 + $0x8] sm:$0xff]
      %v333 = vld [vmem:[%s317 + $0x10] sm:$0xff]
      %v334 = vld [vmem:[%s317 + $0x18] sm:$0xff]
      %v335 = vld [vmem:[%s317 + $0x20] sm:$0xff]
      %v336 = vld [vmem:[%s317 + $0x28] sm:$0xff]
      %v337 = vld [vmem:[%s317 + $0x30] sm:$0xff]
      %v338 = vld [vmem:[%s317 + $0x38] sm:$0xff]
      %v339 = vld [vmem:[%s317 + $0x40] sm:$0xff]
      %v340 = vld [vmem:[%s317 + $0x48] sm:$0xff]
      %v341 = vld [vmem:[%s317 + $0x50] sm:$0xff]
      %v342 = vld [vmem:[%s317 + $0x58] sm:$0xff]
      %v343 = vld [vmem:[%s317 + $0x60] sm:$0xff]
      %v344 = vld [vmem:[%s317 + $0x68] sm:$0xff]
      %v345 = vld [vmem:[%s317 + $0x70] sm:$0xff]
      %v346 = vld [vmem:[%s317 + $0x78] sm:$0xff]
      %v347 = vld [vmem:[%s317 + $0x80] sm:$0xff]
      %v348 = vld [vmem:[%s317 + $0x88] sm:$0xff]
      %v349 = vld [vmem:[%s317 + $0x90] sm:$0xff]
      %v350 = vld [vmem:[%s317 + $0x98] sm:$0xff]
      %v351 = vld [vmem:[%s317 + $0xa0] sm:$0xff]
      %v352 = vld [vmem:[%s317 + $0xa8] sm:$0xff]
      %v353 = vld [vmem:[%s317 + $0xb0] sm:$0xff]
      %v354 = vld [vmem:[%s317 + $0xb8] sm:$0xff]
      %v355 = vld [vmem:[%s317 + $0xc0] sm:$0xff]
      %v356 = vld [vmem:[%s317 + $0xc8] sm:$0xff]
      %v357 = vld [vmem:[%s317 + $0xd0] sm:$0xff]
      %v358 = vld [vmem:[%s317 + $0xd8] sm:$0xff]
      %v359 = vld [vmem:[%s317 + $0xe0] sm:$0xff]
      %v360 = vld [vmem:[%s317 + $0xe8] sm:$0xff]
      %v361 = vld [vmem:[%s317 + $0xf0] sm:$0xff]
      %v362 = vld [vmem:[%s317 + $0xf8] sm:$0xff]
      %v363 = vld [vmem:[%s1] sm:$0xff]
      %v364 = vld [vmem:[%s1 + $0x8] sm:$0xff]
      %v365 = vld [vmem:[%s1 + $0x10] sm:$0xff]
      %v366 = vld [vmem:[%s1 + $0x18] sm:$0xff]
      %v367 = vld [vmem:[%s1 + $0x20] sm:$0xf]
      %vm368 = vcmask 293888
      %v370 = vsel %vm368, %v331, 0
      %v373 = vsel %vm368, %v332, 0
      %v376 = vsel %vm368, %v333, 0
      %v379 = vsel %vm368, %v334, 0
      %v382 = vsel %vm368, %v335, 0
      %v385 = vsel %vm368, %v336, 0
      %v388 = vsel %vm368, %v337, 0
      %v391 = vsel %vm368, %v338, 0
      %v394 = vsel %vm368, %v339, 0
      %v397 = vsel %vm368, %v340, 0
      %v400 = vsel %vm368, %v341, 0
      %v403 = vsel %vm368, %v342, 0
      %v406 = vsel %vm368, %v343, 0
      %v409 = vsel %vm368, %v344, 0
      %v412 = vsel %vm368, %v345, 0
      %v415 = vsel %vm368, %v346, 0
      %v418 = vsel %vm368, %v347, 0
      %v421 = vsel %vm368, %v348, 0
      %v424 = vsel %vm368, %v349, 0
      %v427 = vsel %vm368, %v350, 0
      %v430 = vsel %vm368, %v351, 0
      %v433 = vsel %vm368, %v352, 0
      %v436 = vsel %vm368, %v353, 0
      %v439 = vsel %vm368, %v354, 0
      %v442 = vsel %vm368, %v355, 0
      %v445 = vsel %vm368, %v356, 0
      %v448 = vsel %vm368, %v357, 0
      %v451 = vsel %vm368, %v358, 0
      %v454 = vsel %vm368, %v359, 0
      %v457 = vsel %vm368, %v360, 0
      %v460 = vsel %vm368, %v361, 0
      %v463 = vsel %vm368, %v362, 0
      %vm465 = vcmask 1043456
      %v467 = vsel %vm465, %v367, 0
      %469 = vmatprep.subr.mxu0 0.0
      %470 = vmatpush1.msra.mxu0 %v363
      %471 = vmatprep.subr.mxu0 0.0
      %472 = vmatpush1.msra.mxu0 %v364
      %473 = vmatprep.subr.mxu0 0.0
      %474 = vmatpush1.msra.mxu0 %v365
      %475 = vmatprep.subr.mxu0 0.0
      %476 = vmatpush1.msra.mxu0 %v366
      %477 = vmatprep.subr.mxu0 0.0
      %478 = vmatpush1.msra.mxu0 %v467
      %479 = vmatprep.subr.mxu0 0.0
      %480 = vmatpush1.msra.mxu0 0.0
      %481 = vmatprep.subr.mxu0 0.0
      %482 = vmatpush1.msra.mxu0 0.0
      %483 = vmatprep.subr.mxu0 0.0
      %484 = vmatpush1.msra.mxu0 0.0
      %485 = vmatprep.subr.mxu0 0.0
      %486 = vmatpush1.msra.mxu0 0.0
      %487 = vmatprep.subr.mxu0 0.0
      %488 = vmatpush1.msra.mxu0 0.0
      %489 = vmatprep.subr.mxu0 0.0
      %490 = vmatpush1.msra.mxu0 0.0
      %491 = vmatprep.subr.mxu0 0.0
      %492 = vmatpush1.msra.mxu0 0.0
      %493 = vmatprep.subr.mxu0 0.0
      %494 = vmatpush1.msra.mxu0 0.0
      %495 = vmatprep.subr.mxu0 0.0
      %496 = vmatpush1.msra.mxu0 0.0
      %497 = vmatprep.subr.mxu0 0.0
      %498 = vmatpush1.msra.mxu0 0.0
      %499 = vmatprep.subr.mxu0 0.0
      %500 = vmatpush1.msra.mxu0 0.0
      %501 = vmatprep.subr.mxu0 0.0
      %502 = vmatpush1.msra.mxu0 0.0
      %503 = vmatprep.subr.mxu0 0.0
      %504 = vmatpush1.msra.mxu0 0.0
      %505 = vmatprep.subr.mxu0 0.0
      %506 = vmatpush1.msra.mxu0 0.0
      %507 = vmatprep.subr.mxu0 0.0
      %508 = vmatpush1.msra.mxu0 0.0
      %509 = vmatprep.subr.mxu0 0.0
      %510 = vmatpush1.msra.mxu0 0.0
      %511 = vmatprep.subr.mxu0 0.0
      %512 = vmatpush1.msra.mxu0 0.0
      %513 = vmatprep.subr.mxu0 0.0
      %514 = vmatpush1.msra.mxu0 0.0
      %515 = vmatprep.subr.mxu0 0.0
      %516 = vmatpush1.msra.mxu0 0.0
      %517 = vmatprep.subr.mxu0 0.0
      %518 = vmatpush1.msra.mxu0 0.0
      %519 = vmatprep.subr.mxu0 0.0
      %520 = vmatpush1.msra.mxu0 0.0
      %521 = vmatprep.subr.mxu0 0.0
      %522 = vmatpush1.msra.mxu0 0.0
      %523 = vmatprep.subr.mxu0 0.0
      %524 = vmatpush1.msra.mxu0 0.0
      %525 = vmatprep.subr.mxu0 0.0
      %526 = vmatpush1.msra.mxu0 0.0
      %527 = vmatprep.subr.mxu0 0.0
      %528 = vmatpush1.msra.mxu0 0.0
      %529 = vmatprep.subr.mxu0 0.0
      %530 = vmatpush1.msra.mxu0 0.0
      %531 = vmatprep.subr.mxu0 0.0
      %532 = vmatpush1.msra.mxu0 0.0
      %533 = vmatprep.mubr.f32.mxu0 0.0
      %534 = vmatmul.mubr.f32.gmra.mrb[0].mxu0 %v370
      %v535 = vpop.f32.mrb[0].mxu0
      %v536 = vadd.f32 0.0, %v535
      %v537 = vpop.f32.mrb[0].mxu0
      %538 = vmatprep.mubr.f32.mxu0 0.0
      %539 = vmatmul.mubr.f32.gmra.mrb[0].mxu0 %v373
      %v540 = vpop.f32.mrb[0].mxu0
      %v541 = vadd.f32 0.0, %v540
      %v542 = vpop.f32.mrb[0].mxu0
      %543 = vmatprep.mubr.f32.mxu0 0.0
      %544 = vmatmul.mubr.f32.gmra.mrb[0].mxu0 %v376
      %v545 = vpop.f32.mrb[0].mxu0
      %v546 = vadd.f32 0.0, %v545
      %v547 = vpop.f32.mrb[0].mxu0
      %548 = vmatprep.mubr.f32.mxu0 0.0
      %549 = vmatmul.mubr.f32.gmra.mrb[0].mxu0 %v379
      %v550 = vpop.f32.mrb[0].mxu0
      %v551 = vadd.f32 0.0, %v550
      %v552 = vpop.f32.mrb[0].mxu0
      %553 = vmatprep.mubr.f32.mxu0 0.0
      %554 = vmatmul.mubr.f32.gmra.mrb[0].mxu0 %v382
      %v555 = vpop.f32.mrb[0].mxu0
      %v556 = vadd.f32 0.0, %v555
      %v557 = vpop.f32.mrb[0].mxu0
      %558 = vmatprep.mubr.f32.mxu0 0.0
      %559 = vmatmul.mubr.f32.gmra.mrb[0].mxu0 %v385
      %v560 = vpop.f32.mrb[0].mxu0
      %v561 = vadd.f32 0.0, %v560
      %v562 = vpop.f32.mrb[0].mxu0
      %563 = vmatprep.mubr.f32.mxu0 0.0
      %564 = vmatmul.mubr.f32.gmra.mrb[0].mxu0 %v388
      %v565 = vpop.f32.mrb[0].mxu0
      %v566 = vadd.f32 0.0, %v565
      %v567 = vpop.f32.mrb[0].mxu0
      %568 = vmatprep.mubr.f32.mxu0 0.0
      %569 = vmatmul.mubr.f32.gmra.mrb[0].mxu0 %v391
      %v570 = vpop.f32.mrb[0].mxu0
      %v571 = vadd.f32 0.0, %v570
      %v572 = vpop.f32.mrb[0].mxu0
      %573 = vmatprep.mubr.f32.mxu0 0.0
      %574 = vmatmul.mubr.f32.gmra.mrb[0].mxu0 %v394
      %v575 = vpop.f32.mrb[0].mxu0
      %v576 = vadd.f32 0.0, %v575
      %v577 = vpop.f32.mrb[0].mxu0
      %578 = vmatprep.mubr.f32.mxu0 0.0
      %579 = vmatmul.mubr.f32.gmra.mrb[0].mxu0 %v397
      %v580 = vpop.f32.mrb[0].mxu0
      %v581 = vadd.f32 0.0, %v580
      %v582 = vpop.f32.mrb[0].mxu0
      %583 = vmatprep.mubr.f32.mxu0 0.0
      %584 = vmatmul.mubr.f32.gmra.mrb[0].mxu0 %v400
      %v585 = vpop.f32.mrb[0].mxu0
      %v586 = vadd.f32 0.0, %v585
      %v587 = vpop.f32.mrb[0].mxu0
      %588 = vmatprep.mubr.f32.mxu0 0.0
      %589 = vmatmul.mubr.f32.gmra.mrb[0].mxu0 %v403
      %v590 = vpop.f32.mrb[0].mxu0
      %v591 = vadd.f32 0.0, %v590
      %v592 = vpop.f32.mrb[0].mxu0
      %593 = vmatprep.mubr.f32.mxu0 0.0
      %594 = vmatmul.mubr.f32.gmra.mrb[0].mxu0 %v406
      %v595 = vpop.f32.mrb[0].mxu0
      %v596 = vadd.f32 0.0, %v595
      %v597 = vpop.f32.mrb[0].mxu0
      %598 = vmatprep.mubr.f32.mxu0 0.0
      %599 = vmatmul.mubr.f32.gmra.mrb[0].mxu0 %v409
      %v600 = vpop.f32.mrb[0].mxu0
      %v601 = vadd.f32 0.0, %v600
      %v602 = vpop.f32.mrb[0].mxu0
      %603 = vmatprep.mubr.f32.mxu0 0.0
      %604 = vmatmul.mubr.f32.gmra.mrb[0].mxu0 %v412
      %v605 = vpop.f32.mrb[0].mxu0
      %v606 = vadd.f32 0.0, %v605
      %v607 = vpop.f32.mrb[0].mxu0
      %608 = vmatprep.mubr.f32.mxu0 0.0
      %609 = vmatmul.mubr.f32.gmra.mrb[0].mxu0 %v415
      %v610 = vpop.f32.mrb[0].mxu0
      %v611 = vadd.f32 0.0, %v610
      %v612 = vpop.f32.mrb[0].mxu0
      %613 = vmatprep.mubr.f32.mxu0 0.0
      %614 = vmatmul.mubr.f32.gmra.mrb[0].mxu0 %v418
      %v615 = vpop.f32.mrb[0].mxu0
      %v616 = vadd.f32 0.0, %v615
      %v617 = vpop.f32.mrb[0].mxu0
      %618 = vmatprep.mubr.f32.mxu0 0.0
      %619 = vmatmul.mubr.f32.gmra.mrb[0].mxu0 %v421
      %v620 = vpop.f32.mrb[0].mxu0
      %v621 = vadd.f32 0.0, %v620
      %v622 = vpop.f32.mrb[0].mxu0
      %623 = vmatprep.mubr.f32.mxu0 0.0
      %624 = vmatmul.mubr.f32.gmra.mrb[0].mxu0 %v424
      %v625 = vpop.f32.mrb[0].mxu0
      %v626 = vadd.f32 0.0, %v625
      %v627 = vpop.f32.mrb[0].mxu0
      %628 = vmatprep.mubr.f32.mxu0 0.0
      %629 = vmatmul.mubr.f32.gmra.mrb[0].mxu0 %v427
      %v630 = vpop.f32.mrb[0].mxu0
      %v631 = vadd.f32 0.0, %v630
      %v632 = vpop.f32.mrb[0].mxu0
      %633 = vmatprep.mubr.f32.mxu0 0.0
      %634 = vmatmul.mubr.f32.gmra.mrb[0].mxu0 %v430
      %v635 = vpop.f32.mrb[0].mxu0
      %v636 = vadd.f32 0.0, %v635
      %v637 = vpop.f32.mrb[0].mxu0
      %638 = vmatprep.mubr.f32.mxu0 0.0
      %639 = vmatmul.mubr.f32.gmra.mrb[0].mxu0 %v433
      %v640 = vpop.f32.mrb[0].mxu0
      %v641 = vadd.f32 0.0, %v640
      %v642 = vpop.f32.mrb[0].mxu0
      %643 = vmatprep.mubr.f32.mxu0 0.0
      %644 = vmatmul.mubr.f32.gmra.mrb[0].mxu0 %v436
      %v645 = vpop.f32.mrb[0].mxu0
      %v646 = vadd.f32 0.0, %v645
      %v647 = vpop.f32.mrb[0].mxu0
      %648 = vmatprep.mubr.f32.mxu0 0.0
      %649 = vmatmul.mubr.f32.gmra.mrb[0].mxu0 %v439
      %v650 = vpop.f32.mrb[0].mxu0
      %v651 = vadd.f32 0.0, %v650
      %v652 = vpop.f32.mrb[0].mxu0
      %653 = vmatprep.mubr.f32.mxu0 0.0
      %654 = vmatmul.mubr.f32.gmra.mrb[0].mxu0 %v442
      %v655 = vpop.f32.mrb[0].mxu0
      %v656 = vadd.f32 0.0, %v655
      %v657 = vpop.f32.mrb[0].mxu0
      %658 = vmatprep.mubr.f32.mxu0 0.0
      %659 = vmatmul.mubr.f32.gmra.mrb[0].mxu0 %v445
      %v660 = vpop.f32.mrb[0].mxu0
      %v661 = vadd.f32 0.0, %v660
      %v662 = vpop.f32.mrb[0].mxu0
      %663 = vmatprep.mubr.f32.mxu0 0.0
      %664 = vmatmul.mubr.f32.gmra.mrb[0].mxu0 %v448
      %v665 = vpop.f32.mrb[0].mxu0
      %v666 = vadd.f32 0.0, %v665
      %v667 = vpop.f32.mrb[0].mxu0
      %668 = vmatprep.mubr.f32.mxu0 0.0
      %669 = vmatmul.mubr.f32.gmra.mrb[0].mxu0 %v451
      %v670 = vpop.f32.mrb[0].mxu0
      %v671 = vadd.f32 0.0, %v670
      %v672 = vpop.f32.mrb[0].mxu0
      %673 = vmatprep.mubr.f32.mxu0 0.0
      %674 = vmatmul.mubr.f32.gmra.mrb[0].mxu0 %v454
      %v675 = vpop.f32.mrb[0].mxu0
      %v676 = vadd.f32 0.0, %v675
      %v677 = vpop.f32.mrb[0].mxu0
      %678 = vmatprep.mubr.f32.mxu0 0.0
      %679 = vmatmul.mubr.f32.gmra.mrb[0].mxu0 %v457
      %v680 = vpop.f32.mrb[0].mxu0
      %v681 = vadd.f32 0.0, %v680
      %v682 = vpop.f32.mrb[0].mxu0
      %683 = vmatprep.mubr.f32.mxu0 0.0
      %684 = vmatmul.mubr.f32.gmra.mrb[0].mxu0 %v460
      %v685 = vpop.f32.mrb[0].mxu0
      %v686 = vadd.f32 0.0, %v685
      %v687 = vpop.f32.mrb[0].mxu0
      %688 = vmatprep.mubr.f32.mxu0 0.0
      %689 = vmatmul.mubr.f32.gmra.mrb[0].mxu0 %v463
      %v690 = vpop.f32.mrb[0].mxu0
      %v691 = vadd.f32 0.0, %v690
      %v692 = vpop.f32.mrb[0].mxu0
      %693 = vdwg.mxu0
      %v694 = vld [vmem:[%s2] sm:$0x1]
      %v696 = vlaneseq
      %v697 = vshrl.u32 %v696, 7
      %v698 = vsub.s32 0, %v697
      %v699 = vrot.slane %v694, %v698
      %v701 = vmul.f32 %v536, %v699
      %v702 = vmul.f32 %v541, %v699
      %v703 = vmul.f32 %v546, %v699
      %v704 = vmul.f32 %v551, %v699
      %v705 = vmul.f32 %v556, %v699
      %v706 = vmul.f32 %v561, %v699
      %v707 = vmul.f32 %v566, %v699
      %v708 = vmul.f32 %v571, %v699
      %v709 = vmul.f32 %v576, %v699
      %v710 = vmul.f32 %v581, %v699
      %v711 = vmul.f32 %v586, %v699
      %v712 = vmul.f32 %v591, %v699
      %v713 = vmul.f32 %v596, %v699
      %v714 = vmul.f32 %v601, %v699
      %v715 = vmul.f32 %v606, %v699
      %v716 = vmul.f32 %v611, %v699
      %v717 = vmul.f32 %v616, %v699
      %v718 = vmul.f32 %v621, %v699
      %v719 = vmul.f32 %v626, %v699
      %v720 = vmul.f32 %v631, %v699
      %v721 = vmul.f32 %v636, %v699
      %v722 = vmul.f32 %v641, %v699
      %v723 = vmul.f32 %v646, %v699
      %v724 = vmul.f32 %v651, %v699
      %v725 = vmul.f32 %v656, %v699
      %v726 = vmul.f32 %v661, %v699
      %v727 = vmul.f32 %v666, %v699
      %v728 = vmul.f32 %v671, %v699
      %v729 = vmul.f32 %v676, %v699
      %v730 = vmul.f32 %v681, %v699
      %v731 = vmul.f32 %v686, %v699
      %v732 = vmul.f32 %v691, %v699
      %v733 = vld [vmem:[%s3] sm:$0x1]
      %v735 = vlaneseq
      %v736 = vshrl.u32 %v735, 7
      %v737 = vsub.s32 0, %v736
      %v738 = vrot.slane %v733, %v737
      %v740 = vadd.f32 %v701, %v738
      %v741 = vadd.f32 %v702, %v738
      %v742 = vadd.f32 %v703, %v738
      %v743 = vadd.f32 %v704, %v738
      %v744 = vadd.f32 %v705, %v738
      %v745 = vadd.f32 %v706, %v738
      %v746 = vadd.f32 %v707, %v738
      %v747 = vadd.f32 %v708, %v738
      %v748 = vadd.f32 %v709, %v738
      %v749 = vadd.f32 %v710, %v738
      %v750 = vadd.f32 %v711, %v738
      %v751 = vadd.f32 %v712, %v738
      %v752 = vadd.f32 %v713, %v738
      %v753 = vadd.f32 %v714, %v738
      %v754 = vadd.f32 %v715, %v738
      %v755 = vadd.f32 %v716, %v738
      %v756 = vadd.f32 %v717, %v738
      %v757 = vadd.f32 %v718, %v738
      %v758 = vadd.f32 %v719, %v738
      %v759 = vadd.f32 %v720, %v738
      %v760 = vadd.f32 %v721, %v738
      %v761 = vadd.f32 %v722, %v738
      %v762 = vadd.f32 %v723, %v738
      %v763 = vadd.f32 %v724, %v738
      %v764 = vadd.f32 %v725, %v738
      %v765 = vadd.f32 %v726, %v738
      %v766 = vadd.f32 %v727, %v738
      %v767 = vadd.f32 %v728, %v738
      %v768 = vadd.f32 %v729, %v738
      %v769 = vadd.f32 %v730, %v738
      %v770 = vadd.f32 %v731, %v738
      %v771 = vadd.f32 %v732, %v738
      %v772 = vadd.f32 %v740, 3.0
      %v773 = vadd.f32 %v741, 3.0
      %v774 = vadd.f32 %v742, 3.0
      %v775 = vadd.f32 %v743, 3.0
      %v776 = vadd.f32 %v744, 3.0
      %v777 = vadd.f32 %v745, 3.0
      %v778 = vadd.f32 %v746, 3.0
      %v779 = vadd.f32 %v747, 3.0
      %v780 = vadd.f32 %v748, 3.0
      %v781 = vadd.f32 %v749, 3.0
      %v782 = vadd.f32 %v750, 3.0
      %v783 = vadd.f32 %v751, 3.0
      %v784 = vadd.f32 %v752, 3.0
      %v785 = vadd.f32 %v753, 3.0
      %v786 = vadd.f32 %v754, 3.0
      %v787 = vadd.f32 %v755, 3.0
      %v788 = vadd.f32 %v756, 3.0
      %v789 = vadd.f32 %v757, 3.0
      %v790 = vadd.f32 %v758, 3.0
      %v791 = vadd.f32 %v759, 3.0
      %v792 = vadd.f32 %v760, 3.0
      %v793 = vadd.f32 %v761, 3.0
      %v794 = vadd.f32 %v762, 3.0
      %v795 = vadd.f32 %v763, 3.0
      %v796 = vadd.f32 %v764, 3.0
      %v797 = vadd.f32 %v765, 3.0
      %v798 = vadd.f32 %v766, 3.0
      %v799 = vadd.f32 %v767, 3.0
      %v800 = vadd.f32 %v768, 3.0
      %v801 = vadd.f32 %v769, 3.0
      %v802 = vadd.f32 %v770, 3.0
      %v803 = vadd.f32 %v771, 3.0
      %v804 = vmax.f32 %v772, 0.0
      %v805 = vmax.f32 %v773, 0.0
      %v806 = vmax.f32 %v774, 0.0
      %v807 = vmax.f32 %v775, 0.0
      %v808 = vmax.f32 %v776, 0.0
      %v809 = vmax.f32 %v777, 0.0
      %v810 = vmax.f32 %v778, 0.0
      %v811 = vmax.f32 %v779, 0.0
      %v812 = vmax.f32 %v780, 0.0
      %v813 = vmax.f32 %v781, 0.0
      %v814 = vmax.f32 %v782, 0.0
      %v815 = vmax.f32 %v783, 0.0
      %v816 = vmax.f32 %v784, 0.0
      %v817 = vmax.f32 %v785, 0.0
      %v818 = vmax.f32 %v786, 0.0
      %v819 = vmax.f32 %v787, 0.0
      %v820 = vmax.f32 %v788, 0.0
      %v821 = vmax.f32 %v789, 0.0
      %v822 = vmax.f32 %v790, 0.0
      %v823 = vmax.f32 %v791, 0.0
      %v824 = vmax.f32 %v792, 0.0
      %v825 = vmax.f32 %v793, 0.0
      %v826 = vmax.f32 %v794, 0.0
      %v827 = vmax.f32 %v795, 0.0
      %v828 = vmax.f32 %v796, 0.0
      %v829 = vmax.f32 %v797, 0.0
      %v830 = vmax.f32 %v798, 0.0
      %v831 = vmax.f32 %v799, 0.0
      %v832 = vmax.f32 %v800, 0.0
      %v833 = vmax.f32 %v801, 0.0
      %v834 = vmax.f32 %v802, 0.0
      %v835 = vmax.f32 %v803, 0.0
      %v836 = vmin.f32 %v804, 6.0
      %v837 = vmin.f32 %v805, 6.0
      %v838 = vmin.f32 %v806, 6.0
      %v839 = vmin.f32 %v807, 6.0
      %v840 = vmin.f32 %v808, 6.0
      %v841 = vmin.f32 %v809, 6.0
      %v842 = vmin.f32 %v810, 6.0
      %v843 = vmin.f32 %v811, 6.0
      %v844 = vmin.f32 %v812, 6.0
      %v845 = vmin.f32 %v813, 6.0
      %v846 = vmin.f32 %v814, 6.0
      %v847 = vmin.f32 %v815, 6.0
      %v848 = vmin.f32 %v816, 6.0
      %v849 = vmin.f32 %v817, 6.0
      %v850 = vmin.f32 %v818, 6.0
      %v851 = vmin.f32 %v819, 6.0
      %v852 = vmin.f32 %v820, 6.0
      %v853 = vmin.f32 %v821, 6.0
      %v854 = vmin.f32 %v822, 6.0
      %v855 = vmin.f32 %v823, 6.0
      %v856 = vmin.f32 %v824, 6.0
      %v857 = vmin.f32 %v825, 6.0
      %v858 = vmin.f32 %v826, 6.0
      %v859 = vmin.f32 %v827, 6.0
      %v860 = vmin.f32 %v828, 6.0
      %v861 = vmin.f32 %v829, 6.0
      %v862 = vmin.f32 %v830, 6.0
      %v863 = vmin.f32 %v831, 6.0
      %v864 = vmin.f32 %v832, 6.0
      %v865 = vmin.f32 %v833, 6.0
      %v866 = vmin.f32 %v834, 6.0
      %v867 = vmin.f32 %v835, 6.0
      %v868 = vmul.f32 %v836, 0.16666667
      %v869 = vmul.f32 %v837, 0.16666667
      %v870 = vmul.f32 %v838, 0.16666667
      %v871 = vmul.f32 %v839, 0.16666667
      %v872 = vmul.f32 %v840, 0.16666667
      %v873 = vmul.f32 %v841, 0.16666667
      %v874 = vmul.f32 %v842, 0.16666667
      %v875 = vmul.f32 %v843, 0.16666667
      %v876 = vmul.f32 %v844, 0.16666667
      %v877 = vmul.f32 %v845, 0.16666667
      %v878 = vmul.f32 %v846, 0.16666667
      %v879 = vmul.f32 %v847, 0.16666667
      %v880 = vmul.f32 %v848, 0.16666667
      %v881 = vmul.f32 %v849, 0.16666667
      %v882 = vmul.f32 %v850, 0.16666667
      %v883 = vmul.f32 %v851, 0.16666667
      %v884 = vmul.f32 %v852, 0.16666667
      %v885 = vmul.f32 %v853, 0.16666667
      %v886 = vmul.f32 %v854, 0.16666667
      %v887 = vmul.f32 %v855, 0.16666667
      %v888 = vmul.f32 %v856, 0.16666667
      %v889 = vmul.f32 %v857, 0.16666667
      %v890 = vmul.f32 %v858, 0.16666667
      %v891 = vmul.f32 %v859, 0.16666667
      %v892 = vmul.f32 %v860, 0.16666667
      %v893 = vmul.f32 %v861, 0.16666667
      %v894 = vmul.f32 %v862, 0.16666667
      %v895 = vmul.f32 %v863, 0.16666667
      %v896 = vmul.f32 %v864, 0.16666667
      %v897 = vmul.f32 %v865, 0.16666667
      %v898 = vmul.f32 %v866, 0.16666667
      %v899 = vmul.f32 %v867, 0.16666667
      %v900 = vmul.f32 %v740, %v868
      %v901 = vmul.f32 %v741, %v869
      %v902 = vmul.f32 %v742, %v870
      %v903 = vmul.f32 %v743, %v871
      %v904 = vmul.f32 %v744, %v872
      %v905 = vmul.f32 %v745, %v873
      %v906 = vmul.f32 %v746, %v874
      %v907 = vmul.f32 %v747, %v875
      %v908 = vmul.f32 %v748, %v876
      %v909 = vmul.f32 %v749, %v877
      %v910 = vmul.f32 %v750, %v878
      %v911 = vmul.f32 %v751, %v879
      %v912 = vmul.f32 %v752, %v880
      %v913 = vmul.f32 %v753, %v881
      %v914 = vmul.f32 %v754, %v882
      %v915 = vmul.f32 %v755, %v883
      %v916 = vmul.f32 %v756, %v884
      %v917 = vmul.f32 %v757, %v885
      %v918 = vmul.f32 %v758, %v886
      %v919 = vmul.f32 %v759, %v887
      %v920 = vmul.f32 %v760, %v888
      %v921 = vmul.f32 %v761, %v889
      %v922 = vmul.f32 %v762, %v890
      %v923 = vmul.f32 %v763, %v891
      %v924 = vmul.f32 %v764, %v892
      %v925 = vmul.f32 %v765, %v893
      %v926 = vmul.f32 %v766, %v894
      %v927 = vmul.f32 %v767, %v895
      %v928 = vmul.f32 %v768, %v896
      %v929 = vmul.f32 %v769, %v897
      %v930 = vmul.f32 %v770, %v898
      %v931 = vmul.f32 %v771, %v899
      %v932 = vld [vmem:[%s4] sm:$0xff]
      %vm933 = vcmask 64512
      %v935 = vsel %vm933, %v900, 0
      %v938 = vsel %vm933, %v901, 0
      %v941 = vsel %vm933, %v902, 0
      %v944 = vsel %vm933, %v903, 0
      %v947 = vsel %vm933, %v904, 0
      %v950 = vsel %vm933, %v905, 0
      %v953 = vsel %vm933, %v906, 0
      %v956 = vsel %vm933, %v907, 0
      %v959 = vsel %vm933, %v908, 0
      %v962 = vsel %vm933, %v909, 0
      %v965 = vsel %vm933, %v910, 0
      %v968 = vsel %vm933, %v911, 0
      %v971 = vsel %vm933, %v912, 0
      %v974 = vsel %vm933, %v913, 0
      %v977 = vsel %vm933, %v914, 0
      %v980 = vsel %vm933, %v915, 0
      %v983 = vsel %vm933, %v916, 0
      %v986 = vsel %vm933, %v917, 0
      %v989 = vsel %vm933, %v918, 0
      %v992 = vsel %vm933, %v919, 0
      %v995 = vsel %vm933, %v920, 0
      %v998 = vsel %vm933, %v921, 0
      %v1001 = vsel %vm933, %v922, 0
      %v1004 = vsel %vm933, %v923, 0
      %v1007 = vsel %vm933, %v924, 0
      %v1010 = vsel %vm933, %v925, 0
      %v1013 = vsel %vm933, %v926, 0
      %v1016 = vsel %vm933, %v927, 0
      %v1019 = vsel %vm933, %v928, 0
      %v1022 = vsel %vm933, %v929, 0
      %v1025 = vsel %vm933, %v930, 0
      %v1028 = vsel %vm933, %v931, 0
      %1030 = vmatprep.subr.mxu0 0.0
      %1031 = vmatpush1.msra.mxu0 %v932
      %1032 = vmatprep.subr.mxu0 0.0
      %1033 = vmatpush1.msra.mxu0 0.0
      %1034 = vmatprep.subr.mxu0 0.0
      %1035 = vmatpush1.msra.mxu0 0.0
      %1036 = vmatprep.subr.mxu0 0.0
      %1037 = vmatpush1.msra.mxu0 0.0
      %1038 = vmatprep.subr.mxu0 0.0
      %1039 = vmatpush1.msra.mxu0 0.0
      %1040 = vmatprep.subr.mxu0 0.0
      %1041 = vmatpush1.msra.mxu0 0.0
      %1042 = vmatprep.subr.mxu0 0.0
      %1043 = vmatpush1.msra.mxu0 0.0
      %1044 = vmatprep.subr.mxu0 0.0
      %1045 = vmatpush1.msra.mxu0 0.0
      %1046 = vmatprep.subr.mxu0 0.0
      %1047 = vmatpush1.msra.mxu0 0.0
      %1048 = vmatprep.subr.mxu0 0.0
      %1049 = vmatpush1.msra.mxu0 0.0
      %1050 = vmatprep.subr.mxu0 0.0
      %1051 = vmatpush1.msra.mxu0 0.0
      %1052 = vmatprep.subr.mxu0 0.0
      %1053 = vmatpush1.msra.mxu0 0.0
      %1054 = vmatprep.subr.mxu0 0.0
      %1055 = vmatpush1.msra.mxu0 0.0
      %1056 = vmatprep.subr.mxu0 0.0
      %1057 = vmatpush1.msra.mxu0 0.0
      %1058 = vmatprep.subr.mxu0 0.0
      %1059 = vmatpush1.msra.mxu0 0.0
      %1060 = vmatprep.subr.mxu0 0.0
      %1061 = vmatpush1.msra.mxu0 0.0
      %1062 = vmatprep.subr.mxu0 0.0
      %1063 = vmatpush1.msra.mxu0 0.0
      %1064 = vmatprep.subr.mxu0 0.0
      %1065 = vmatpush1.msra.mxu0 0.0
      %1066 = vmatprep.subr.mxu0 0.0
      %1067 = vmatpush1.msra.mxu0 0.0
      %1068 = vmatprep.subr.mxu0 0.0
      %1069 = vmatpush1.msra.mxu0 0.0
      %1070 = vmatprep.subr.mxu0 0.0
      %1071 = vmatpush1.msra.mxu0 0.0
      %1072 = vmatprep.subr.mxu0 0.0
      %1073 = vmatpush1.msra.mxu0 0.0
      %1074 = vmatprep.subr.mxu0 0.0
      %1075 = vmatpush1.msra.mxu0 0.0
      %1076 = vmatprep.subr.mxu0 0.0
      %1077 = vmatpush1.msra.mxu0 0.0
      %1078 = vmatprep.subr.mxu0 0.0
      %1079 = vmatpush1.msra.mxu0 0.0
      %1080 = vmatprep.subr.mxu0 0.0
      %1081 = vmatpush1.msra.mxu0 0.0
      %1082 = vmatprep.subr.mxu0 0.0
      %1083 = vmatpush1.msra.mxu0 0.0
      %1084 = vmatprep.subr.mxu0 0.0
      %1085 = vmatpush1.msra.mxu0 0.0
      %1086 = vmatprep.subr.mxu0 0.0
      %1087 = vmatpush1.msra.mxu0 0.0
      %1088 = vmatprep.subr.mxu0 0.0
      %1089 = vmatpush1.msra.mxu0 0.0
      %1090 = vmatprep.subr.mxu0 0.0
      %1091 = vmatpush1.msra.mxu0 0.0
      %1092 = vmatprep.subr.mxu0 0.0
      %1093 = vmatpush1.msra.mxu0 0.0
      %1094 = vmatprep.mubr.f32.mxu0 0.0
      %1095 = vmatmul.mubr.f32.gmra.mrb[0].mxu0 %v935
      %v1096 = vpop.f32.mrb[0].mxu0
      %v1097 = vadd.f32 0.0, %v1096
      %v1098 = vpop.f32.mrb[0].mxu0
      %1099 = vmatprep.mubr.f32.mxu0 0.0
      %1100 = vmatmul.mubr.f32.gmra.mrb[0].mxu0 %v938
      %v1101 = vpop.f32.mrb[0].mxu0
      %v1102 = vadd.f32 0.0, %v1101
      %v1103 = vpop.f32.mrb[0].mxu0
      %1104 = vmatprep.mubr.f32.mxu0 0.0
      %1105 = vmatmul.mubr.f32.gmra.mrb[0].mxu0 %v941
      %v1106 = vpop.f32.mrb[0].mxu0
      %v1107 = vadd.f32 0.0, %v1106
      %v1108 = vpop.f32.mrb[0].mxu0
      %1109 = vmatprep.mubr.f32.mxu0 0.0
      %1110 = vmatmul.mubr.f32.gmra.mrb[0].mxu0 %v944
      %v1111 = vpop.f32.mrb[0].mxu0
      %v1112 = vadd.f32 0.0, %v1111
      %v1113 = vpop.f32.mrb[0].mxu0
      %1114 = vmatprep.mubr.f32.mxu0 0.0
      %1115 = vmatmul.mubr.f32.gmra.mrb[0].mxu0 %v947
      %v1116 = vpop.f32.mrb[0].mxu0
      %v1117 = vadd.f32 0.0, %v1116
      %v1118 = vpop.f32.mrb[0].mxu0
      %1119 = vmatprep.mubr.f32.mxu0 0.0
      %1120 = vmatmul.mubr.f32.gmra.mrb[0].mxu0 %v950
      %v1121 = vpop.f32.mrb[0].mxu0
      %v1122 = vadd.f32 0.0, %v1121
      %v1123 = vpop.f32.mrb[0].mxu0
      %1124 = vmatprep.mubr.f32.mxu0 0.0
      %1125 = vmatmul.mubr.f32.gmra.mrb[0].mxu0 %v953
      %v1126 = vpop.f32.mrb[0].mxu0
      %v1127 = vadd.f32 0.0, %v1126
      %v1128 = vpop.f32.mrb[0].mxu0
      %1129 = vmatprep.mubr.f32.mxu0 0.0
      %1130 = vmatmul.mubr.f32.gmra.mrb[0].mxu0 %v956
      %v1131 = vpop.f32.mrb[0].mxu0
      %v1132 = vadd.f32 0.0, %v1131
      %v1133 = vpop.f32.mrb[0].mxu0
      %1134 = vmatprep.mubr.f32.mxu0 0.0
      %1135 = vmatmul.mubr.f32.gmra.mrb[0].mxu0 %v959
      %v1136 = vpop.f32.mrb[0].mxu0
      %v1137 = vadd.f32 0.0, %v1136
      %v1138 = vpop.f32.mrb[0].mxu0
      %1139 = vmatprep.mubr.f32.mxu0 0.0
      %1140 = vmatmul.mubr.f32.gmra.mrb[0].mxu0 %v962
      %v1141 = vpop.f32.mrb[0].mxu0
      %v1142 = vadd.f32 0.0, %v1141
      %v1143 = vpop.f32.mrb[0].mxu0
      %1144 = vmatprep.mubr.f32.mxu0 0.0
      %1145 = vmatmul.mubr.f32.gmra.mrb[0].mxu0 %v965
      %v1146 = vpop.f32.mrb[0].mxu0
      %v1147 = vadd.f32 0.0, %v1146
      %v1148 = vpop.f32.mrb[0].mxu0
      %1149 = vmatprep.mubr.f32.mxu0 0.0
      %1150 = vmatmul.mubr.f32.gmra.mrb[0].mxu0 %v968
      %v1151 = vpop.f32.mrb[0].mxu0
      %v1152 = vadd.f32 0.0, %v1151
      %v1153 = vpop.f32.mrb[0].mxu0
      %1154 = vmatprep.mubr.f32.mxu0 0.0
      %1155 = vmatmul.mubr.f32.gmra.mrb[0].mxu0 %v971
      %v1156 = vpop.f32.mrb[0].mxu0
      %v1157 = vadd.f32 0.0, %v1156
      %v1158 = vpop.f32.mrb[0].mxu0
      %1159 = vmatprep.mubr.f32.mxu0 0.0
      %1160 = vmatmul.mubr.f32.gmra.mrb[0].mxu0 %v974
      %v1161 = vpop.f32.mrb[0].mxu0
      %v1162 = vadd.f32 0.0, %v1161
      %v1163 = vpop.f32.mrb[0].mxu0
      %1164 = vmatprep.mubr.f32.mxu0 0.0
      %1165 = vmatmul.mubr.f32.gmra.mrb[0].mxu0 %v977
      %v1166 = vpop.f32.mrb[0].mxu0
      %v1167 = vadd.f32 0.0, %v1166
      %v1168 = vpop.f32.mrb[0].mxu0
      %1169 = vmatprep.mubr.f32.mxu0 0.0
      %1170 = vmatmul.mubr.f32.gmra.mrb[0].mxu0 %v980
      %v1171 = vpop.f32.mrb[0].mxu0
      %v1172 = vadd.f32 0.0, %v1171
      %v1173 = vpop.f32.mrb[0].mxu0
      %1174 = vmatprep.mubr.f32.mxu0 0.0
      %1175 = vmatmul.mubr.f32.gmra.mrb[0].mxu0 %v983
      %v1176 = vpop.f32.mrb[0].mxu0
      %v1177 = vadd.f32 0.0, %v1176
      %v1178 = vpop.f32.mrb[0].mxu0
      %1179 = vmatprep.mubr.f32.mxu0 0.0
      %1180 = vmatmul.mubr.f32.gmra.mrb[0].mxu0 %v986
      %v1181 = vpop.f32.mrb[0].mxu0
      %v1182 = vadd.f32 0.0, %v1181
      %v1183 = vpop.f32.mrb[0].mxu0
      %1184 = vmatprep.mubr.f32.mxu0 0.0
      %1185 = vmatmul.mubr.f32.gmra.mrb[0].mxu0 %v989
      %v1186 = vpop.f32.mrb[0].mxu0
      %v1187 = vadd.f32 0.0, %v1186
      %v1188 = vpop.f32.mrb[0].mxu0
      %1189 = vmatprep.mubr.f32.mxu0 0.0
      %1190 = vmatmul.mubr.f32.gmra.mrb[0].mxu0 %v992
      %v1191 = vpop.f32.mrb[0].mxu0
      %v1192 = vadd.f32 0.0, %v1191
      %v1193 = vpop.f32.mrb[0].mxu0
      %1194 = vmatprep.mubr.f32.mxu0 0.0
      %1195 = vmatmul.mubr.f32.gmra.mrb[0].mxu0 %v995
      %v1196 = vpop.f32.mrb[0].mxu0
      %v1197 = vadd.f32 0.0, %v1196
      %v1198 = vpop.f32.mrb[0].mxu0
      %1199 = vmatprep.mubr.f32.mxu0 0.0
      %1200 = vmatmul.mubr.f32.gmra.mrb[0].mxu0 %v998
      %v1201 = vpop.f32.mrb[0].mxu0
      %v1202 = vadd.f32 0.0, %v1201
      %v1203 = vpop.f32.mrb[0].mxu0
      %1204 = vmatprep.mubr.f32.mxu0 0.0
      %1205 = vmatmul.mubr.f32.gmra.mrb[0].mxu0 %v1001
      %v1206 = vpop.f32.mrb[0].mxu0
      %v1207 = vadd.f32 0.0, %v1206
      %v1208 = vpop.f32.mrb[0].mxu0
      %1209 = vmatprep.mubr.f32.mxu0 0.0
      %1210 = vmatmul.mubr.f32.gmra.mrb[0].mxu0 %v1004
      %v1211 = vpop.f32.mrb[0].mxu0
      %v1212 = vadd.f32 0.0, %v1211
      %v1213 = vpop.f32.mrb[0].mxu0
      %1214 = vmatprep.mubr.f32.mxu0 0.0
      %1215 = vmatmul.mubr.f32.gmra.mrb[0].mxu0 %v1007
      %v1216 = vpop.f32.mrb[0].mxu0
      %v1217 = vadd.f32 0.0, %v1216
      %v1218 = vpop.f32.mrb[0].mxu0
      %1219 = vmatprep.mubr.f32.mxu0 0.0
      %1220 = vmatmul.mubr.f32.gmra.mrb[0].mxu0 %v1010
      %v1221 = vpop.f32.mrb[0].mxu0
      %v1222 = vadd.f32 0.0, %v1221
      %v1223 = vpop.f32.mrb[0].mxu0
      %1224 = vmatprep.mubr.f32.mxu0 0.0
      %1225 = vmatmul.mubr.f32.gmra.mrb[0].mxu0 %v1013
      %v1226 = vpop.f32.mrb[0].mxu0
      %v1227 = vadd.f32 0.0, %v1226
      %v1228 = vpop.f32.mrb[0].mxu0
      %1229 = vmatprep.mubr.f32.mxu0 0.0
      %1230 = vmatmul.mubr.f32.gmra.mrb[0].mxu0 %v1016
      %v1231 = vpop.f32.mrb[0].mxu0
      %v1232 = vadd.f32 0.0, %v1231
      %v1233 = vpop.f32.mrb[0].mxu0
      %1234 = vmatprep.mubr.f32.mxu0 0.0
      %1235 = vmatmul.mubr.f32.gmra.mrb[0].mxu0 %v1019
      %v1236 = vpop.f32.mrb[0].mxu0
      %v1237 = vadd.f32 0.0, %v1236
      %v1238 = vpop.f32.mrb[0].mxu0
      %1239 = vmatprep.mubr.f32.mxu0 0.0
      %1240 = vmatmul.mubr.f32.gmra.mrb[0].mxu0 %v1022
      %v1241 = vpop.f32.mrb[0].mxu0
      %v1242 = vadd.f32 0.0, %v1241
      %v1243 = vpop.f32.mrb[0].mxu0
      %1244 = vmatprep.mubr.f32.mxu0 0.0
      %1245 = vmatmul.mubr.f32.gmra.mrb[0].mxu0 %v1025
      %v1246 = vpop.f32.mrb[0].mxu0
      %v1247 = vadd.f32 0.0, %v1246
      %v1248 = vpop.f32.mrb[0].mxu0
      %1249 = vmatprep.mubr.f32.mxu0 0.0
      %1250 = vmatmul.mubr.f32.gmra.mrb[0].mxu0 %v1028
      %v1251 = vpop.f32.mrb[0].mxu0
      %v1252 = vadd.f32 0.0, %v1251
      %v1253 = vpop.f32.mrb[0].mxu0
      %1254 = vdwg.mxu0
      %v1255 = vld [vmem:[%s5] sm:$0x1]
      %v1257 = vlaneseq
      %v1258 = vshrl.u32 %v1257, 7
      %v1259 = vsub.s32 0, %v1258
      %v1260 = vrot.slane %v1255, %v1259
      %v1262 = vmul.f32 %v1097, %v1260
      %v1263 = vmul.f32 %v1102, %v1260
      %v1264 = vmul.f32 %v1107, %v1260
      %v1265 = vmul.f32 %v1112, %v1260
      %v1266 = vmul.f32 %v1117, %v1260
      %v1267 = vmul.f32 %v1122, %v1260
      %v1268 = vmul.f32 %v1127, %v1260
      %v1269 = vmul.f32 %v1132, %v1260
      %v1270 = vmul.f32 %v1137, %v1260
      %v1271 = vmul.f32 %v1142, %v1260
      %v1272 = vmul.f32 %v1147, %v1260
      %v1273 = vmul.f32 %v1152, %v1260
      %v1274 = vmul.f32 %v1157, %v1260
      %v1275 = vmul.f32 %v1162, %v1260
      %v1276 = vmul.f32 %v1167, %v1260
      %v1277 = vmul.f32 %v1172, %v1260
      %v1278 = vmul.f32 %v1177, %v1260
      %v1279 = vmul.f32 %v1182, %v1260
      %v1280 = vmul.f32 %v1187, %v1260
      %v1281 = vmul.f32 %v1192, %v1260
      %v1282 = vmul.f32 %v1197, %v1260
      %v1283 = vmul.f32 %v1202, %v1260
      %v1284 = vmul.f32 %v1207, %v1260
      %v1285 = vmul.f32 %v1212, %v1260
      %v1286 = vmul.f32 %v1217, %v1260
      %v1287 = vmul.f32 %v1222, %v1260
      %v1288 = vmul.f32 %v1227, %v1260
      %v1289 = vmul.f32 %v1232, %v1260
      %v1290 = vmul.f32 %v1237, %v1260
      %v1291 = vmul.f32 %v1242, %v1260
      %v1292 = vmul.f32 %v1247, %v1260
      %v1293 = vmul.f32 %v1252, %v1260
      %v1294 = vld [vmem:[%s6] sm:$0x1]
      %v1296 = vlaneseq
      %v1297 = vshrl.u32 %v1296, 7
      %v1298 = vsub.s32 0, %v1297
      %v1299 = vrot.slane %v1294, %v1298
      %v1301 = vadd.f32 %v1262, %v1299
      %v1302 = vadd.f32 %v1263, %v1299
      %v1303 = vadd.f32 %v1264, %v1299
      %v1304 = vadd.f32 %v1265, %v1299
      %v1305 = vadd.f32 %v1266, %v1299
      %v1306 = vadd.f32 %v1267, %v1299
      %v1307 = vadd.f32 %v1268, %v1299
      %v1308 = vadd.f32 %v1269, %v1299
      %v1309 = vadd.f32 %v1270, %v1299
      %v1310 = vadd.f32 %v1271, %v1299
      %v1311 = vadd.f32 %v1272, %v1299
      %v1312 = vadd.f32 %v1273, %v1299
      %v1313 = vadd.f32 %v1274, %v1299
      %v1314 = vadd.f32 %v1275, %v1299
      %v1315 = vadd.f32 %v1276, %v1299
      %v1316 = vadd.f32 %v1277, %v1299
      %v1317 = vadd.f32 %v1278, %v1299
      %v1318 = vadd.f32 %v1279, %v1299
      %v1319 = vadd.f32 %v1280, %v1299
      %v1320 = vadd.f32 %v1281, %v1299
      %v1321 = vadd.f32 %v1282, %v1299
      %v1322 = vadd.f32 %v1283, %v1299
      %v1323 = vadd.f32 %v1284, %v1299
      %v1324 = vadd.f32 %v1285, %v1299
      %v1325 = vadd.f32 %v1286, %v1299
      %v1326 = vadd.f32 %v1287, %v1299
      %v1327 = vadd.f32 %v1288, %v1299
      %v1328 = vadd.f32 %v1289, %v1299
      %v1329 = vadd.f32 %v1290, %v1299
      %v1330 = vadd.f32 %v1291, %v1299
      %v1331 = vadd.f32 %v1292, %v1299
      %v1332 = vadd.f32 %v1293, %v1299
      %v1333 = vld [vmem:[%s323] sm:$0xff]
      %v1334 = vld [vmem:[%s323 + $0x8] sm:$0xff]
      %v1335 = vld [vmem:[%s323 + $0x10] sm:$0xff]
      %v1336 = vld [vmem:[%s323 + $0x18] sm:$0xff]
      %v1337 = vld [vmem:[%s323 + $0x20] sm:$0xff]
      %v1338 = vld [vmem:[%s323 + $0x28] sm:$0xff]
      %v1339 = vld [vmem:[%s323 + $0x30] sm:$0xff]
      %v1340 = vld [vmem:[%s323 + $0x38] sm:$0xff]
      %v1341 = vld [vmem:[%s323 + $0x40] sm:$0xff]
      %v1342 = vld [vmem:[%s323 + $0x48] sm:$0xff]
      %v1343 = vld [vmem:[%s323 + $0x50] sm:$0xff]
      %v1344 = vld [vmem:[%s323 + $0x58] sm:$0xff]
      %v1345 = vld [vmem:[%s323 + $0x60] sm:$0xff]
      %v1346 = vld [vmem:[%s323 + $0x68] sm:$0xff]
      %v1347 = vld [vmem:[%s323 + $0x70] sm:$0xff]
      %v1348 = vld [vmem:[%s323 + $0x78] sm:$0xff]
      %v1349 = vld [vmem:[%s323 + $0x80] sm:$0xff]
      %v1350 = vld [vmem:[%s323 + $0x88] sm:$0xff]
      %v1351 = vld [vmem:[%s323 + $0x90] sm:$0xff]
      %v1352 = vld [vmem:[%s323 + $0x98] sm:$0xff]
      %v1353 = vld [vmem:[%s323 + $0xa0] sm:$0xff]
      %v1354 = vld [vmem:[%s323 + $0xa8] sm:$0xff]
      %v1355 = vld [vmem:[%s323 + $0xb0] sm:$0xff]
      %v1356 = vld [vmem:[%s323 + $0xb8] sm:$0xff]
      %v1357 = vld [vmem:[%s323 + $0xc0] sm:$0xff]
      %v1358 = vld [vmem:[%s323 + $0xc8] sm:$0xff]
      %v1359 = vld [vmem:[%s323 + $0xd0] sm:$0xff]
      %v1360 = vld [vmem:[%s323 + $0xd8] sm:$0xff]
      %v1361 = vld [vmem:[%s323 + $0xe0] sm:$0xff]
      %v1362 = vld [vmem:[%s323 + $0xe8] sm:$0xff]
      %v1363 = vld [vmem:[%s323 + $0xf0] sm:$0xff]
      %v1364 = vld [vmem:[%s323 + $0xf8] sm:$0xff]
      %v1365 = vadd.f32 %v1301, %v1333
      %v1366 = vadd.f32 %v1302, %v1334
      %v1367 = vadd.f32 %v1303, %v1335
      %v1368 = vadd.f32 %v1304, %v1336
      %v1369 = vadd.f32 %v1305, %v1337
      %v1370 = vadd.f32 %v1306, %v1338
      %v1371 = vadd.f32 %v1307, %v1339
      %v1372 = vadd.f32 %v1308, %v1340
      %v1373 = vadd.f32 %v1309, %v1341
      %v1374 = vadd.f32 %v1310, %v1342
      %v1375 = vadd.f32 %v1311, %v1343
      %v1376 = vadd.f32 %v1312, %v1344
      %v1377 = vadd.f32 %v1313, %v1345
      %v1378 = vadd.f32 %v1314, %v1346
      %v1379 = vadd.f32 %v1315, %v1347
      %v1380 = vadd.f32 %v1316, %v1348
      %v1381 = vadd.f32 %v1317, %v1349
      %v1382 = vadd.f32 %v1318, %v1350
      %v1383 = vadd.f32 %v1319, %v1351
      %v1384 = vadd.f32 %v1320, %v1352
      %v1385 = vadd.f32 %v1321, %v1353
      %v1386 = vadd.f32 %v1322, %v1354
      %v1387 = vadd.f32 %v1323, %v1355
      %v1388 = vadd.f32 %v1324, %v1356
      %v1389 = vadd.f32 %v1325, %v1357
      %v1390 = vadd.f32 %v1326, %v1358
      %v1391 = vadd.f32 %v1327, %v1359
      %v1392 = vadd.f32 %v1328, %v1360
      %v1393 = vadd.f32 %v1329, %v1361
      %v1394 = vadd.f32 %v1330, %v1362
      %v1395 = vadd.f32 %v1331, %v1363
      %v1396 = vadd.f32 %v1332, %v1364
      %vm1397 = vcmask 31744
      %1398 = vst.msk [vmem:[%s329] sm:$0xff] %vm1397, %v1365
      %1399 = vst.msk [vmem:[%s329 + $0x8] sm:$0xff] %vm1397, %v1366
      %1400 = vst.msk [vmem:[%s329 + $0x10] sm:$0xff] %vm1397, %v1367
      %1401 = vst.msk [vmem:[%s329 + $0x18] sm:$0xff] %vm1397, %v1368
      %1402 = vst.msk [vmem:[%s329 + $0x20] sm:$0xff] %vm1397, %v1369
      %1403 = vst.msk [vmem:[%s329 + $0x28] sm:$0xff] %vm1397, %v1370
      %1404 = vst.msk [vmem:[%s329 + $0x30] sm:$0xff] %vm1397, %v1371
      %1405 = vst.msk [vmem:[%s329 + $0x38] sm:$0xff] %vm1397, %v1372
      %1406 = vst.msk [vmem:[%s329 + $0x40] sm:$0xff] %vm1397, %v1373
      %1407 = vst.msk [vmem:[%s329 + $0x48] sm:$0xff] %vm1397, %v1374
      %1408 = vst.msk [vmem:[%s329 + $0x50] sm:$0xff] %vm1397, %v1375
      %1409 = vst.msk [vmem:[%s329 + $0x58] sm:$0xff] %vm1397, %v1376
      %1410 = vst.msk [vmem:[%s329 + $0x60] sm:$0xff] %vm1397, %v1377
      %1411 = vst.msk [vmem:[%s329 + $0x68] sm:$0xff] %vm1397, %v1378
      %1412 = vst.msk [vmem:[%s329 + $0x70] sm:$0xff] %vm1397, %v1379
      %1413 = vst.msk [vmem:[%s329 + $0x78] sm:$0xff] %vm1397, %v1380
      %1414 = vst.msk [vmem:[%s329 + $0x80] sm:$0xff] %vm1397, %v1381
      %1415 = vst.msk [vmem:[%s329 + $0x88] sm:$0xff] %vm1397, %v1382
      %1416 = vst.msk [vmem:[%s329 + $0x90] sm:$0xff] %vm1397, %v1383
      %1417 = vst.msk [vmem:[%s329 + $0x98] sm:$0xff] %vm1397, %v1384
      %1418 = vst.msk [vmem:[%s329 + $0xa0] sm:$0xff] %vm1397, %v1385
      %1419 = vst.msk [vmem:[%s329 + $0xa8] sm:$0xff] %vm1397, %v1386
      %1420 = vst.msk [vmem:[%s329 + $0xb0] sm:$0xff] %vm1397, %v1387
      %1421 = vst.msk [vmem:[%s329 + $0xb8] sm:$0xff] %vm1397, %v1388
      %1422 = vst.msk [vmem:[%s329 + $0xc0] sm:$0xff] %vm1397, %v1389
      %1423 = vst.msk [vmem:[%s329 + $0xc8] sm:$0xff] %vm1397, %v1390
      %1424 = vst.msk [vmem:[%s329 + $0xd0] sm:$0xff] %vm1397, %v1391
      %1425 = vst.msk [vmem:[%s329 + $0xd8] sm:$0xff] %vm1397, %v1392
      %1426 = vst.msk [vmem:[%s329 + $0xe0] sm:$0xff] %vm1397, %v1393
      %1427 = vst.msk [vmem:[%s329 + $0xe8] sm:$0xff] %vm1397, %v1394
      %1428 = vst.msk [vmem:[%s329 + $0xf0] sm:$0xff] %vm1397, %v1395
      %1429 = vst.msk [vmem:[%s329 + $0xf8] sm:$0xff] %vm1397, %v1396
      %s1430 = smul.u32 32, %s19
      %p1431 = scmp.lt.s32.totalorder %s1430, 63
      %s1432 = scalar_select %p1431, %s1430, 63
      %s1433 = smul.addr %s1432, 8
      %s1434 = scalar_lea.vmem %s8, %s1433
      // Predicated region
      $region53: #{wfused_ibn_forward.1} parent=51 // pred_check
        %p1435 = pneg %p215
      $region54: #{wfused_ibn_forward.1} parent=51 // pred_check_branch
        %1437 = sbr.rel (%p1435) target = $region56
      $region55: #{wfused_ibn_forward.1} parent=51 // pred_region
        %s1438 = smul.u32 32, %s19
      $region56: #{wfused_ibn_forward.1} parent=51 // pred_fallthru
        _
    $region52: #{wfused_ibn_forward.1} parent=5 // pred_fallthru
      _
    %p1439 = scmp.le.s32.totalorder 2, %s14
    // Predicated region
    $region57: #{wfused_ibn_forward.1} parent=5 // pred_check
      %p1440 = pneg %p1439
    $region58: #{wfused_ibn_forward.1} parent=5 // pred_check_branch
      %1442 = sbr.rel (%p1440) target = $region60
    $region59: #{wfused_ibn_forward.1} parent=5 // pred_region
      %s1443 = ssub.s32 %s14, 2
      // Predicated region
      $region61: #{wfused_ibn_forward.1} parent=59 // pred_check
        %p1444 = pneg %p221
      $region62: #{wfused_ibn_forward.1} parent=59 // pred_check_branch
        %1446 = sbr.rel (%p1444) target = $region64
      $region63: #{wfused_ibn_forward.1} parent=59 // pred_region
        %s1447 = smul.u32 32, %s20
        %p1448 = scmp.lt.s32.totalorder %s1447, 63
        %s1449 = scalar_select %p1448, %s1447, 63
        %s1450 = smul.addr %s1449, 8
        %s1451 = scalar_lea.vmem %s8, %s1450
      $region64: #{wfused_ibn_forward.1} parent=59 // pred_fallthru
        _
    $region60: #{wfused_ibn_forward.1} parent=5 // pred_fallthru
      _
  $region6: #{wfused_ibn_forward.1} parent=0 // loop_footer
    %s18 = sadd.s32 1, %s14
  $region7: #{wfused_ibn_forward.1} parent=0 // loop_footer_branch
    %13 = sbr.rel target = $region3
  $region8: #{wfused_ibn_forward.1} parent=0 // loop_exit
    _

</llo_original>
